<compile_context>
chip_gen: v6e
topology: v6e:2x2x1
jax: 0.10.0
libtpu: 0.0.40
codegen_flags: <defaults>
</compile_context>

<pallas_src>
import jax
import jax.numpy as jnp
from jax import lax
from jax.experimental import pallas as pl
from jax.experimental.pallas import tpu as pltpu


def interest_evolving_kernel(
    # scalar prefetch (SMEM)
    tmax_ref,
    # tensor inputs (VMEM)
    q_ref, keys_ref, lens_ref,
    w_ih_r_ref, w_ih_z_ref, w_ih_n_ref,
    w_hh_r_ref, w_hh_z_ref, w_hh_n_ref,
    b_r_ref, b_z_ref, b_in_ref, b_hn_ref,
    w1q_ref, w1h_ref, w1p_ref, b1_ref,
    w2_ref, b2_ref, w3_ref, b3_ref,
    # output
    out_ref,
    # VMEM scratch
    gi_r_s, gi_z_s, gi_n_s, h_seq_s,
):
    T, Bt, H = keys_ref.shape

    # ---- 1) hoisted input projection: one matmul per gate over all T*Bt rows ----
    keys_flat = keys_ref[...].reshape(T * Bt, H)          # time-major flat rows: t*Bt + b
    gi_r_s[...] = (jnp.dot(keys_flat, w_ih_r_ref[...],
                           preferred_element_type=jnp.float32) + b_r_ref[...]
                   ).reshape(T, Bt, H)
    gi_z_s[...] = (jnp.dot(keys_flat, w_ih_z_ref[...],
                           preferred_element_type=jnp.float32) + b_z_ref[...]
                   ).reshape(T, Bt, H)
    gi_n_s[...] = (jnp.dot(keys_flat, w_ih_n_ref[...],
                           preferred_element_type=jnp.float32) + b_in_ref[...]
                   ).reshape(T, Bt, H)

    # Steps t >= t_max are never written by the loop; zero them so the masked
    # (weight == 0) tail contributes exact zeros rather than garbage.
    h_seq_s[...] = jnp.zeros_like(h_seq_s)

    w_hh_r = w_hh_r_ref[...]
    w_hh_z = w_hh_z_ref[...]
    w_hh_n = w_hh_n_ref[...]
    b_hn = b_hn_ref[...]

    # ---- 2) GRU recurrence: only h @ W_hh remains in the serial loop ----
    t_max = tmax_ref[pl.program_id(0)]        # max(keys_length) within this batch tile

    def step(t, h):
        gh_r = jnp.dot(h, w_hh_r, preferred_element_type=jnp.float32)
        gh_z = jnp.dot(h, w_hh_z, preferred_element_type=jnp.float32)
        gh_n = jnp.dot(h, w_hh_n, preferred_element_type=jnp.float32) + b_hn
        r = jax.nn.sigmoid(gi_r_s[t] + gh_r)
        z = jax.nn.sigmoid(gi_z_s[t] + gh_z)
        n = jnp.tanh(gi_n_s[t] + r * gh_n)
        h_new = (1.0 - z) * n + z * h
        h_seq_s[t] = h_new
        return h_new

    lax.fori_loop(0, t_max, step, jnp.zeros((Bt, H), jnp.float32))

    # ---- 3) DIN attention MLP, batched once over all (t, b) positions ----
    q = q_ref[...]                                        # [Bt, H]
    h_all = h_seq_s[...]                                  # [T, Bt, H]
    h_flat = h_all.reshape(T * Bt, H)
    qh_flat = (q[None, :, :] * h_all).reshape(T * Bt, H)

    A1 = w1q_ref.shape[1]
    # time-invariant query term of the folded first attention layer
    q_term = jnp.dot(q, w1q_ref[...], preferred_element_type=jnp.float32) + b1_ref[...]
    q_term_flat = jnp.broadcast_to(q_term[None, :, :], (T, Bt, A1)).reshape(T * Bt, A1)

    z1 = (q_term_flat
          + jnp.dot(h_flat, w1h_ref[...], preferred_element_type=jnp.float32)
          + jnp.dot(qh_flat, w1p_ref[...], preferred_element_type=jnp.float32))
    a1 = jax.nn.sigmoid(z1)                                              # [T*Bt, A1]
    a2 = jax.nn.sigmoid(jnp.dot(a1, w2_ref[...],
                                preferred_element_type=jnp.float32) + b2_ref[...])
    # final [A2 -> 1] projection as VPU multiply + lane reduction
    score = jnp.sum(a2 * w3_ref[...], axis=-1, keepdims=True) + b3_ref[...]   # [T*Bt, 1]

    # ---- 4) mask padded positions and weighted-sum over time ----
    score3 = score.reshape(T, Bt, 1)
    t_idx = lax.broadcasted_iota(jnp.int32, (T, Bt, 1), 0)
    score3 = jnp.where(t_idx < lens_ref[...][None, :, :], score3, 0.0)
    out_ref[...] = jnp.sum(score3 * h_all, axis=0)        # [Bt, H]


def interest_evolving(query, keys, keys_length, params, *, b_tile=8):
    """query: [B, H] f32, keys: [B, T, H] f32, keys_length: [B] int -> [B, H] f32."""
    B, H = query.shape
    _, T, _ = keys.shape

    # Pad the batch up to a sublane-aligned tile (padded rows have length 0 ->
    # fully masked -> exact zero output; sliced off at the end).
    B_pad = ((B + b_tile - 1) // b_tile) * b_tile
    pad = B_pad - B
    nbt = B_pad // b_tile

    q_p = jnp.pad(query.astype(jnp.float32), ((0, pad), (0, 0)))
    keys_p = jnp.pad(keys.astype(jnp.float32), ((0, pad), (0, 0), (0, 0)))
    lens_p = jnp.pad(keys_length.astype(jnp.int32), ((0, pad),))

    # Time-major keys so both the hoisted projection and the per-step loads are
    # clean leading-axis accesses inside the kernel.
    # TODO(synk): fold this transpose into the kernel (pltpu.einshape) and
    # lane-pad H to a multiple of 128 for unmasked output stores at large H.
    keys_tm = jnp.transpose(keys_p, (1, 0, 2))            # [T, B_pad, H]
    lens_col = lens_p.reshape(B_pad, 1)
    tmax = jnp.max(lens_p.reshape(nbt, b_tile), axis=1).astype(jnp.int32)   # per-tile bound

    # ---- one-time weight preparation (outside T and batch) ----
    w_ih, w_hh = params['w_ih'], params['w_hh']           # [H, 3H], gate order (r, z, n)
    b_ih, b_hh = params['b_ih'], params['b_hh']           # [1, 3H]
    w_ih_r, w_ih_z, w_ih_n = w_ih[:, :H], w_ih[:, H:2 * H], w_ih[:, 2 * H:]
    w_hh_r, w_hh_z, w_hh_n = w_hh[:, :H], w_hh[:, H:2 * H], w_hh[:, 2 * H:]
    b_r = b_ih[:, :H] + b_hh[:, :H]                       # r/z gate biases pre-summed
    b_z = b_ih[:, H:2 * H] + b_hh[:, H:2 * H]
    b_in = b_ih[:, 2 * H:]                                # n-gate: b_ih outside r*(...)
    b_hn = b_hh[:, 2 * H:]                                # n-gate: b_hh inside r*(...)

    w1 = params['w1']                                     # [4H, 64]; rows: q, k, q-k, q*k
    w1_qf = w1[:H] + w1[2 * H:3 * H]
    w1_hf = w1[H:2 * H] - w1[2 * H:3 * H]
    w1_p = w1[3 * H:]
    b1, w2, b2 = params['b1'], params['w2'], params['b2']
    w3_row = params['w3'].T                               # [1, 16]
    b3 = params['b3']

    tensor_inputs = (
        q_p, keys_tm, lens_col,
        w_ih_r, w_ih_z, w_ih_n, w_hh_r, w_hh_z, w_hh_n,
        b_r, b_z, b_in, b_hn,
        w1_qf, w1_hf, w1_p, b1, w2, b2, w3_row, b3,
    )

    full = lambda s: pl.BlockSpec(s, lambda i, tm: (0, 0))
    in_specs = [
        pl.BlockSpec((b_tile, H), lambda i, tm: (i, 0)),          # query tile
        pl.BlockSpec((T, b_tile, H), lambda i, tm: (0, i, 0)),    # keys tile (time-major)
        pl.BlockSpec((b_tile, 1), lambda i, tm: (i, 0)),          # keys_length tile
    ] + [full(w.shape) for w in tensor_inputs[3:]]                # weights: whole arrays

    grid_spec = pltpu.PrefetchScalarGridSpec(
        num_scalar_prefetch=1,
        grid=(nbt,),
        in_specs=in_specs,
        out_specs=pl.BlockSpec((b_tile, H), lambda i, tm: (i, 0)),
        scratch_shapes=[pltpu.VMEM((T, b_tile, H), jnp.float32)] * 4,
    )

    out = pl.pallas_call(
        interest_evolving_kernel,
        out_shape=jax.ShapeDtypeStruct((B_pad, H), jnp.float32),
        grid_spec=grid_spec,
        compiler_params=pltpu.CompilerParams(
            dimension_semantics=("parallel",),
            vmem_limit_bytes=32 * 1024 * 1024,
        ),
    )(tmax, *tensor_inputs)
    return out[:B]


def reference(query, keys, keys_length, p):
    """Pure-JAX reference mirroring the PyTorch forward (GRU path)."""
    B, T, H = keys.shape
    h = jnp.zeros((B, H), jnp.float32)
    interests = []
    for t in range(T):
        x = keys[:, t, :]
        gi = x @ p['w_ih'] + p['b_ih']
        gh = h @ p['w_hh'] + p['b_hh']
        r = jax.nn.sigmoid(gi[:, :H] + gh[:, :H])
        z = jax.nn.sigmoid(gi[:, H:2 * H] + gh[:, H:2 * H])
        n = jnp.tanh(gi[:, 2 * H:] + r * gh[:, 2 * H:])
        h = (1.0 - z) * n + z * h
        interests.append(h)
    interests = jnp.stack(interests, axis=1)                       # [B, T, H]
    q_b = jnp.broadcast_to(query[:, None, :], (B, T, H))
    att_in = jnp.concatenate(
        [q_b, interests, q_b - interests, q_b * interests], axis=-1)
    a1 = jax.nn.sigmoid(att_in @ p['w1'] + p['b1'])
    a2 = jax.nn.sigmoid(a1 @ p['w2'] + p['b2'])
    score = (a2 @ p['w3'] + p['b3'])[..., 0]                       # [B, T]
    valid = jnp.arange(T)[None, :] < keys_length[:, None]
    score = jnp.where(valid, score, 0.0)
    return jnp.einsum('bt,bth->bh', score, interests)


if __name__ == "__main__":
    B, T, H = 4, 8, 32
    key = jax.random.PRNGKey(0)
    ks = jax.random.split(key, 12)

    init_std = 0.001  # matches nn.init.normal_(std=init_std) on GRU weights
    params = {
        # nn.GRU(input_size=H, hidden_size=H): weight_ih_l0/weight_hh_l0 are [3H, H];
        # stored here pre-transposed to [H, 3H].
        'w_ih': init_std * jax.random.normal(ks[0], (H, 3 * H), jnp.float32),
        'w_hh': init_std * jax.random.normal(ks[1], (H, 3 * H), jnp.float32),
        'b_ih': 0.01 * jax.random.normal(ks[2], (1, 3 * H), jnp.float32),
        'b_hh': 0.01 * jax.random.normal(ks[3], (1, 3 * H), jnp.float32),
        # LocalActivationUnit: DNN(4H -> 64 -> 16, sigmoid) + Linear(16 -> 1)
        'w1': 0.1 * jax.random.normal(ks[4], (4 * H, 64), jnp.float32),
        'b1': 0.01 * jax.random.normal(ks[5], (1, 64), jnp.float32),
        'w2': 0.1 * jax.random.normal(ks[6], (64, 16), jnp.float32),
        'b2': 0.01 * jax.random.normal(ks[7], (1, 16), jnp.float32),
        'w3': 0.1 * jax.random.normal(ks[8], (16, 1), jnp.float32),
        'b3': jnp.zeros((1, 1), jnp.float32),
    }

    query = jax.random.normal(ks[9], (B, H), jnp.float32)
    keys = jax.random.normal(ks[10], (B, T, H), jnp.float32)
    keys_length = jnp.array([5, 8, 0, 3], jnp.int32)   # includes a zero-length row

    out = interest_evolving(query, keys, keys_length, params)
    out = jax.block_until_ready(out)

    ref = reference(query, keys, keys_length, params)
    assert out.shape == (B, H)
    assert bool(jnp.allclose(out, ref, atol=2e-5, rtol=2e-5)), "kernel/reference mismatch"
    # zero-length row must be exactly the zero_outputs row
    assert bool(jnp.allclose(out[2], jnp.zeros((H,), jnp.float32)))

    print("KERNEL_OK")
</pallas_src>

<mosaic_0001>
module attributes {stable_mosaic.version = 11 : i64} {
  func.func @interest_evolving_kernel(%arg0: i32, %arg1: memref<1xi32, #tpu.memory_space<smem>>, %arg2: memref<8x32xf32, #tpu.memory_space<vmem>>, %arg3: memref<8x8x32xf32, #tpu.memory_space<vmem>>, %arg4: memref<8x1xi32, #tpu.memory_space<vmem>>, %arg5: memref<32x32xf32, #tpu.memory_space<vmem>>, %arg6: memref<32x32xf32, #tpu.memory_space<vmem>>, %arg7: memref<32x32xf32, #tpu.memory_space<vmem>>, %arg8: memref<32x32xf32, #tpu.memory_space<vmem>>, %arg9: memref<32x32xf32, #tpu.memory_space<vmem>>, %arg10: memref<32x32xf32, #tpu.memory_space<vmem>>, %arg11: memref<1x32xf32, #tpu.memory_space<vmem>>, %arg12: memref<1x32xf32, #tpu.memory_space<vmem>>, %arg13: memref<1x32xf32, #tpu.memory_space<vmem>>, %arg14: memref<1x32xf32, #tpu.memory_space<vmem>>, %arg15: memref<32x64xf32, #tpu.memory_space<vmem>>, %arg16: memref<32x64xf32, #tpu.memory_space<vmem>>, %arg17: memref<32x64xf32, #tpu.memory_space<vmem>>, %arg18: memref<1x64xf32, #tpu.memory_space<vmem>>, %arg19: memref<64x16xf32, #tpu.memory_space<vmem>>, %arg20: memref<1x16xf32, #tpu.memory_space<vmem>>, %arg21: memref<1x16xf32, #tpu.memory_space<vmem>>, %arg22: memref<1x1xf32, #tpu.memory_space<vmem>>, %arg23: memref<8x32xf32, #tpu.memory_space<vmem>>, %arg24: memref<8x8x32xf32, #tpu.memory_space<vmem>>, %arg25: memref<8x8x32xf32, #tpu.memory_space<vmem>>, %arg26: memref<8x8x32xf32, #tpu.memory_space<vmem>>, %arg27: memref<8x8x32xf32, #tpu.memory_space<vmem>>) attributes {dimension_semantics = [#tpu.dimension_semantics<parallel>], iteration_bounds = array<i64: 1>, scalar_prefetch = 1 : i64, scratch_operands = 4 : i64, tpu.core_type = #tpu.core_type<tc>, window_params = [{transform_indices = @transform_0, window_bounds = array<i64: 8, 32>}, {transform_indices = @transform_1, window_bounds = array<i64: 8, 8, 32>}, {transform_indices = @transform_2, window_bounds = array<i64: 8, 1>}, {pipeline_mode = #tpu.pipeline_mode<synchronous>, transform_indices = @transform_3, window_bounds = array<i64: 32, 32>}, {pipeline_mode = #tpu.pipeline_mode<synchronous>, transform_indices = @transform_4, window_bounds = array<i64: 32, 32>}, {pipeline_mode = #tpu.pipeline_mode<synchronous>, transform_indices = @transform_5, window_bounds = array<i64: 32, 32>}, {pipeline_mode = #tpu.pipeline_mode<synchronous>, transform_indices = @transform_6, window_bounds = array<i64: 32, 32>}, {pipeline_mode = #tpu.pipeline_mode<synchronous>, transform_indices = @transform_7, window_bounds = array<i64: 32, 32>}, {pipeline_mode = #tpu.pipeline_mode<synchronous>, transform_indices = @transform_8, window_bounds = array<i64: 32, 32>}, {pipeline_mode = #tpu.pipeline_mode<synchronous>, transform_indices = @transform_9, window_bounds = array<i64: 1, 32>}, {pipeline_mode = #tpu.pipeline_mode<synchronous>, transform_indices = @transform_10, window_bounds = array<i64: 1, 32>}, {pipeline_mode = #tpu.pipeline_mode<synchronous>, transform_indices = @transform_11, window_bounds = array<i64: 1, 32>}, {pipeline_mode = #tpu.pipeline_mode<synchronous>, transform_indices = @transform_12, window_bounds = array<i64: 1, 32>}, {pipeline_mode = #tpu.pipeline_mode<synchronous>, transform_indices = @transform_13, window_bounds = array<i64: 32, 64>}, {pipeline_mode = #tpu.pipeline_mode<synchronous>, transform_indices = @transform_14, window_bounds = array<i64: 32, 64>}, {pipeline_mode = #tpu.pipeline_mode<synchronous>, transform_indices = @transform_15, window_bounds = array<i64: 32, 64>}, {pipeline_mode = #tpu.pipeline_mode<synchronous>, transform_indices = @transform_16, window_bounds = array<i64: 1, 64>}, {pipeline_mode = #tpu.pipeline_mode<synchronous>, transform_indices = @transform_17, window_bounds = array<i64: 64, 16>}, {pipeline_mode = #tpu.pipeline_mode<synchronous>, transform_indices = @transform_18, window_bounds = array<i64: 1, 16>}, {pipeline_mode = #tpu.pipeline_mode<synchronous>, transform_indices = @transform_19, window_bounds = array<i64: 1, 16>}, {pipeline_mode = #tpu.pipeline_mode<synchronous>, transform_indices = @transform_20, window_bounds = array<i64: 1, 1>}, {transform_indices = @transform_21, window_bounds = array<i64: 8, 32>}]} {
    %c0 = arith.constant 0 : index
    %c0_0 = arith.constant 0 : index
    %c0_1 = arith.constant 0 : index
    %0 = vector.load %arg3[%c0, %c0_0, %c0_1] : memref<8x8x32xf32, #tpu.memory_space<vmem>>, vector<8x8x32xf32>
    %1 = vector.shape_cast %0 : vector<8x8x32xf32> to vector<64x32xf32>
    %c0_2 = arith.constant 0 : index
    %c0_3 = arith.constant 0 : index
    %2 = vector.load %arg5[%c0_2, %c0_3] : memref<32x32xf32, #tpu.memory_space<vmem>>, vector<32x32xf32>
    %cst = arith.constant dense<0.000000e+00> : vector<64x32xf32>
    %3 = tpu.matmul %1, %2, %cst {dimension_numbers = #tpu.dot_dimension_numbers<[1], [0], [0], [1], [0, 0, 1, 1], [], []>} : vector<64x32xf32>, vector<32x32xf32>, vector<64x32xf32> -> vector<64x32xf32>
    %c0_4 = arith.constant 0 : index
    %c0_5 = arith.constant 0 : index
    %4 = vector.load %arg11[%c0_4, %c0_5] : memref<1x32xf32, #tpu.memory_space<vmem>>, vector<1x32xf32>
    %5 = vector.broadcast %4 : vector<1x32xf32> to vector<64x32xf32>
    %6 = arith.addf %3, %5 : vector<64x32xf32>
    %7 = vector.shape_cast %6 : vector<64x32xf32> to vector<8x8x32xf32>
    %c0_6 = arith.constant 0 : index
    %c0_7 = arith.constant 0 : index
    %c0_8 = arith.constant 0 : index
    %8 = vector.load %arg24[%c0_6, %c0_7, %c0_8] : memref<8x8x32xf32, #tpu.memory_space<vmem>>, vector<8x8x32xf32>
    tpu.vector_store %arg24[%c0_6, %c0_7, %c0_8], %7 {strides = array<i32>} : memref<8x8x32xf32, #tpu.memory_space<vmem>>, vector<8x8x32xf32>,
    %c0_9 = arith.constant 0 : index
    %c0_10 = arith.constant 0 : index
    %9 = vector.load %arg6[%c0_9, %c0_10] : memref<32x32xf32, #tpu.memory_space<vmem>>, vector<32x32xf32>
    %cst_11 = arith.constant dense<0.000000e+00> : vector<64x32xf32>
    %10 = tpu.matmul %1, %9, %cst_11 {dimension_numbers = #tpu.dot_dimension_numbers<[1], [0], [0], [1], [0, 0, 1, 1], [], []>} : vector<64x32xf32>, vector<32x32xf32>, vector<64x32xf32> -> vector<64x32xf32>
    %c0_12 = arith.constant 0 : index
    %c0_13 = arith.constant 0 : index
    %11 = vector.load %arg12[%c0_12, %c0_13] : memref<1x32xf32, #tpu.memory_space<vmem>>, vector<1x32xf32>
    %12 = vector.broadcast %11 : vector<1x32xf32> to vector<64x32xf32>
    %13 = arith.addf %10, %12 : vector<64x32xf32>
    %14 = vector.shape_cast %13 : vector<64x32xf32> to vector<8x8x32xf32>
    %c0_14 = arith.constant 0 : index
    %c0_15 = arith.constant 0 : index
    %c0_16 = arith.constant 0 : index
    %15 = vector.load %arg25[%c0_14, %c0_15, %c0_16] : memref<8x8x32xf32, #tpu.memory_space<vmem>>, vector<8x8x32xf32>
    tpu.vector_store %arg25[%c0_14, %c0_15, %c0_16], %14 {strides = array<i32>} : memref<8x8x32xf32, #tpu.memory_space<vmem>>, vector<8x8x32xf32>,
    %c0_17 = arith.constant 0 : index
    %c0_18 = arith.constant 0 : index
    %16 = vector.load %arg7[%c0_17, %c0_18] : memref<32x32xf32, #tpu.memory_space<vmem>>, vector<32x32xf32>
    %cst_19 = arith.constant dense<0.000000e+00> : vector<64x32xf32>
    %17 = tpu.matmul %1, %16, %cst_19 {dimension_numbers = #tpu.dot_dimension_numbers<[1], [0], [0], [1], [0, 0, 1, 1], [], []>} : vector<64x32xf32>, vector<32x32xf32>, vector<64x32xf32> -> vector<64x32xf32>
    %c0_20 = arith.constant 0 : index
    %c0_21 = arith.constant 0 : index
    %18 = vector.load %arg13[%c0_20, %c0_21] : memref<1x32xf32, #tpu.memory_space<vmem>>, vector<1x32xf32>
    %19 = vector.broadcast %18 : vector<1x32xf32> to vector<64x32xf32>
    %20 = arith.addf %17, %19 : vector<64x32xf32>
    %21 = vector.shape_cast %20 : vector<64x32xf32> to vector<8x8x32xf32>
    %c0_22 = arith.constant 0 : index
    %c0_23 = arith.constant 0 : index
    %c0_24 = arith.constant 0 : index
    %22 = vector.load %arg26[%c0_22, %c0_23, %c0_24] : memref<8x8x32xf32, #tpu.memory_space<vmem>>, vector<8x8x32xf32>
    tpu.vector_store %arg26[%c0_22, %c0_23, %c0_24], %21 {strides = array<i32>} : memref<8x8x32xf32, #tpu.memory_space<vmem>>, vector<8x8x32xf32>,
    %cst_25 = arith.constant 0.000000e+00 : f32
    %23 = vector.broadcast %cst_25 : f32 to vector<8x8x32xf32>
    %c0_26 = arith.constant 0 : index
    %c0_27 = arith.constant 0 : index
    %c0_28 = arith.constant 0 : index
    %24 = vector.load %arg27[%c0_26, %c0_27, %c0_28] : memref<8x8x32xf32, #tpu.memory_space<vmem>>, vector<8x8x32xf32>
    tpu.vector_store %arg27[%c0_26, %c0_27, %c0_28], %23 {strides = array<i32>} : memref<8x8x32xf32, #tpu.memory_space<vmem>>, vector<8x8x32xf32>,
    %c0_29 = arith.constant 0 : index
    %c0_30 = arith.constant 0 : index
    %25 = vector.load %arg8[%c0_29, %c0_30] : memref<32x32xf32, #tpu.memory_space<vmem>>, vector<32x32xf32>
    %c0_31 = arith.constant 0 : index
    %c0_32 = arith.constant 0 : index
    %26 = vector.load %arg9[%c0_31, %c0_32] : memref<32x32xf32, #tpu.memory_space<vmem>>, vector<32x32xf32>
    %c0_33 = arith.constant 0 : index
    %c0_34 = arith.constant 0 : index
    %27 = vector.load %arg10[%c0_33, %c0_34] : memref<32x32xf32, #tpu.memory_space<vmem>>, vector<32x32xf32>
    %c0_35 = arith.constant 0 : index
    %c0_36 = arith.constant 0 : index
    %28 = vector.load %arg14[%c0_35, %c0_36] : memref<1x32xf32, #tpu.memory_space<vmem>>, vector<1x32xf32>
    %29 = arith.index_cast %arg0 : i32 to index
    %30 = memref.load %arg1[%29] : memref<1xi32, #tpu.memory_space<smem>>
    %cst_37 = arith.constant 0.000000e+00 : f32
    %31 = vector.broadcast %cst_37 : f32 to vector<8x32xf32>
    %c0_i32 = arith.constant 0 : i32
    %32 = arith.subi %30, %c0_i32 : i32
    %33 = arith.addi %c0_i32, %32 : i32
    %c1_i32 = arith.constant 1 : i32
    %34 = scf.for %arg28 = %c0_i32 to %33 step %c1_i32 iter_args(%arg29 = %31) -> (vector<8x32xf32>)  : i32 {
      %cst_72 = arith.constant dense<0.000000e+00> : vector<8x32xf32>
      %92 = tpu.matmul %arg29, %25, %cst_72 {dimension_numbers = #tpu.dot_dimension_numbers<[1], [0], [0], [1], [0, 0, 1, 1], [], []>} : vector<8x32xf32>, vector<32x32xf32>, vector<8x32xf32> -> vector<8x32xf32>
      %cst_73 = arith.constant dense<0.000000e+00> : vector<8x32xf32>
      %93 = tpu.matmul %arg29, %26, %cst_73 {dimension_numbers = #tpu.dot_dimension_numbers<[1], [0], [0], [1], [0, 0, 1, 1], [], []>} : vector<8x32xf32>, vector<32x32xf32>, vector<8x32xf32> -> vector<8x32xf32>
      %cst_74 = arith.constant dense<0.000000e+00> : vector<8x32xf32>
      %94 = tpu.matmul %arg29, %27, %cst_74 {dimension_numbers = #tpu.dot_dimension_numbers<[1], [0], [0], [1], [0, 0, 1, 1], [], []>} : vector<8x32xf32>, vector<32x32xf32>, vector<8x32xf32> -> vector<8x32xf32>
      %95 = vector.broadcast %28 : vector<1x32xf32> to vector<8x32xf32>
      %96 = arith.addf %94, %95 : vector<8x32xf32>
      %97 = arith.index_cast %arg28 : i32 to index
      %c0_75 = arith.constant 0 : index
      %c0_76 = arith.constant 0 : index
      %98 = vector.load %arg24[%97, %c0_75, %c0_76] : memref<8x8x32xf32, #tpu.memory_space<vmem>>, vector<1x8x32xf32>
      %99 = vector.shape_cast %98 : vector<1x8x32xf32> to vector<8x32xf32>
      %100 = arith.addf %99, %92 : vector<8x32xf32>
      %101 = arith.negf %100 : vector<8x32xf32>
      %102 = math.exp %101 : vector<8x32xf32>
      %cst_77 = arith.constant 1.000000e+00 : f32
      %103 = vector.broadcast %cst_77 : f32 to vector<8x32xf32>
      %104 = arith.addf %103, %102 : vector<8x32xf32>
      %105 = arith.divf %103, %104 : vector<8x32xf32>
      %106 = arith.index_cast %arg28 : i32 to index
      %c0_78 = arith.constant 0 : index
      %c0_79 = arith.constant 0 : index
      %107 = vector.load %arg25[%106, %c0_78, %c0_79] : memref<8x8x32xf32, #tpu.memory_space<vmem>>, vector<1x8x32xf32>
      %108 = vector.shape_cast %107 : vector<1x8x32xf32> to vector<8x32xf32>
      %109 = arith.addf %108, %93 : vector<8x32xf32>
      %110 = arith.negf %109 : vector<8x32xf32>
      %111 = math.exp %110 : vector<8x32xf32>
      %cst_80 = arith.constant 1.000000e+00 : f32
      %112 = vector.broadcast %cst_80 : f32 to vector<8x32xf32>
      %113 = arith.addf %112, %111 : vector<8x32xf32>
      %114 = arith.divf %112, %113 : vector<8x32xf32>
      %115 = arith.index_cast %arg28 : i32 to index
      %c0_81 = arith.constant 0 : index
      %c0_82 = arith.constant 0 : index
      %116 = vector.load %arg26[%115, %c0_81, %c0_82] : memref<8x8x32xf32, #tpu.memory_space<vmem>>, vector<1x8x32xf32>
      %117 = vector.shape_cast %116 : vector<1x8x32xf32> to vector<8x32xf32>
      %118 = arith.mulf %105, %96 : vector<8x32xf32>
      %119 = arith.addf %117, %118 : vector<8x32xf32>
      %120 = math.tanh %119 : vector<8x32xf32>
      %cst_83 = arith.constant 1.000000e+00 : f32
      %121 = vector.broadcast %cst_83 : f32 to vector<8x32xf32>
      %122 = arith.subf %121, %114 : vector<8x32xf32>
      %123 = arith.mulf %122, %120 : vector<8x32xf32>
      %124 = arith.mulf %114, %arg29 : vector<8x32xf32>
      %125 = arith.addf %123, %124 : vector<8x32xf32>
      %126 = arith.index_cast %arg28 : i32 to index
      %c0_84 = arith.constant 0 : index
      %c0_85 = arith.constant 0 : index
      %127 = vector.load %arg27[%126, %c0_84, %c0_85] : memref<8x8x32xf32, #tpu.memory_space<vmem>>, vector<1x8x32xf32>
      %128 = vector.shape_cast %127 : vector<1x8x32xf32> to vector<8x32xf32>
      %129 = vector.shape_cast %125 : vector<8x32xf32> to vector<1x8x32xf32>
      tpu.vector_store %arg27[%126, %c0_84, %c0_85], %129 {strides = array<i32>} : memref<8x8x32xf32, #tpu.memory_space<vmem>>, vector<1x8x32xf32>,
      scf.yield %125 : vector<8x32xf32>
    }
    %c0_38 = arith.constant 0 : index
    %c0_39 = arith.constant 0 : index
    %35 = vector.load %arg2[%c0_38, %c0_39] : memref<8x32xf32, #tpu.memory_space<vmem>>, vector<8x32xf32>
    %c0_40 = arith.constant 0 : index
    %c0_41 = arith.constant 0 : index
    %c0_42 = arith.constant 0 : index
    %36 = vector.load %arg27[%c0_40, %c0_41, %c0_42] : memref<8x8x32xf32, #tpu.memory_space<vmem>>, vector<8x8x32xf32>
    %37 = vector.shape_cast %36 : vector<8x8x32xf32> to vector<64x32xf32>
    %38 = vector.shape_cast %35 : vector<8x32xf32> to vector<1x8x32xf32>
    %39 = vector.broadcast %38 : vector<1x8x32xf32> to vector<8x8x32xf32>
    %40 = arith.mulf %39, %36 : vector<8x8x32xf32>
    %41 = vector.shape_cast %40 : vector<8x8x32xf32> to vector<64x32xf32>
    %c0_43 = arith.constant 0 : index
    %c0_44 = arith.constant 0 : index
    %42 = vector.load %arg15[%c0_43, %c0_44] : memref<32x64xf32, #tpu.memory_space<vmem>>, vector<32x64xf32>
    %cst_45 = arith.constant dense<0.000000e+00> : vector<8x64xf32>
    %43 = tpu.matmul %35, %42, %cst_45 {dimension_numbers = #tpu.dot_dimension_numbers<[1], [0], [0], [1], [0, 0, 1, 1], [], []>} : vector<8x32xf32>, vector<32x64xf32>, vector<8x64xf32> -> vector<8x64xf32>
    %c0_46 = arith.constant 0 : index
    %c0_47 = arith.constant 0 : index
    %44 = vector.load %arg18[%c0_46, %c0_47] : memref<1x64xf32, #tpu.memory_space<vmem>>, vector<1x64xf32>
    %45 = vector.broadcast %44 : vector<1x64xf32> to vector<8x64xf32>
    %46 = arith.addf %43, %45 : vector<8x64xf32>
    %47 = vector.shape_cast %46 : vector<8x64xf32> to vector<1x8x64xf32>
    %48 = vector.shape_cast %47 : vector<1x8x64xf32> to vector<1x8x64xf32>
    %49 = vector.broadcast %48 : vector<1x8x64xf32> to vector<8x8x64xf32>
    %50 = vector.shape_cast %49 : vector<8x8x64xf32> to vector<64x64xf32>
    %c0_48 = arith.constant 0 : index
    %c0_49 = arith.constant 0 : index
    %51 = vector.load %arg16[%c0_48, %c0_49] : memref<32x64xf32, #tpu.memory_space<vmem>>, vector<32x64xf32>
    %cst_50 = arith.constant dense<0.000000e+00> : vector<64x64xf32>
    %52 = tpu.matmul %37, %51, %cst_50 {dimension_numbers = #tpu.dot_dimension_numbers<[1], [0], [0], [1], [0, 0, 1, 1], [], []>} : vector<64x32xf32>, vector<32x64xf32>, vector<64x64xf32> -> vector<64x64xf32>
    %53 = arith.addf %50, %52 : vector<64x64xf32>
    %c0_51 = arith.constant 0 : index
    %c0_52 = arith.constant 0 : index
    %54 = vector.load %arg17[%c0_51, %c0_52] : memref<32x64xf32, #tpu.memory_space<vmem>>, vector<32x64xf32>
    %cst_53 = arith.constant dense<0.000000e+00> : vector<64x64xf32>
    %55 = tpu.matmul %41, %54, %cst_53 {dimension_numbers = #tpu.dot_dimension_numbers<[1], [0], [0], [1], [0, 0, 1, 1], [], []>} : vector<64x32xf32>, vector<32x64xf32>, vector<64x64xf32> -> vector<64x64xf32>
    %56 = arith.addf %53, %55 : vector<64x64xf32>
    %57 = arith.negf %56 : vector<64x64xf32>
    %58 = math.exp %57 : vector<64x64xf32>
    %cst_54 = arith.constant 1.000000e+00 : f32
    %59 = vector.broadcast %cst_54 : f32 to vector<64x64xf32>
    %60 = arith.addf %59, %58 : vector<64x64xf32>
    %61 = arith.divf %59, %60 : vector<64x64xf32>
    %c0_55 = arith.constant 0 : index
    %c0_56 = arith.constant 0 : index
    %62 = vector.load %arg19[%c0_55, %c0_56] : memref<64x16xf32, #tpu.memory_space<vmem>>, vector<64x16xf32>
    %cst_57 = arith.constant dense<0.000000e+00> : vector<64x16xf32>
    %63 = tpu.matmul %61, %62, %cst_57 {dimension_numbers = #tpu.dot_dimension_numbers<[1], [0], [0], [1], [0, 0, 1, 1], [], []>} : vector<64x64xf32>, vector<64x16xf32>, vector<64x16xf32> -> vector<64x16xf32>
    %c0_58 = arith.constant 0 : index
    %c0_59 = arith.constant 0 : index
    %64 = vector.load %arg20[%c0_58, %c0_59] : memref<1x16xf32, #tpu.memory_space<vmem>>, vector<1x16xf32>
    %65 = vector.broadcast %64 : vector<1x16xf32> to vector<64x16xf32>
    %66 = arith.addf %63, %65 : vector<64x16xf32>
    %67 = arith.negf %66 : vector<64x16xf32>
    %68 = math.exp %67 : vector<64x16xf32>
    %cst_60 = arith.constant 1.000000e+00 : f32
    %69 = vector.broadcast %cst_60 : f32 to vector<64x16xf32>
    %70 = arith.addf %69, %68 : vector<64x16xf32>
    %71 = arith.divf %69, %70 : vector<64x16xf32>
    %c0_61 = arith.constant 0 : index
    %c0_62 = arith.constant 0 : index
    %72 = vector.load %arg21[%c0_61, %c0_62] : memref<1x16xf32, #tpu.memory_space<vmem>>, vector<1x16xf32>
    %73 = vector.broadcast %72 : vector<1x16xf32> to vector<64x16xf32>
    %74 = arith.mulf %71, %73 : vector<64x16xf32>
    %cst_63 = arith.constant dense<0.000000e+00> : vector<64xf32>
    %75 = vector.multi_reduction <add>, %74, %cst_63 [1] : vector<64x16xf32> to vector<64xf32>
    %76 = vector.shape_cast %75 : vector<64xf32> to vector<64x1xf32>
    %c0_64 = arith.constant 0 : index
    %c0_65 = arith.constant 0 : index
    %77 = vector.load %arg22[%c0_64, %c0_65] : memref<1x1xf32, #tpu.memory_space<vmem>>, vector<1x1xf32>
    %78 = vector.broadcast %77 : vector<1x1xf32> to vector<64x1xf32>
    %79 = arith.addf %76, %78 : vector<64x1xf32>
    %80 = vector.shape_cast %79 : vector<64x1xf32> to vector<8x8x1xf32>
    %81 = tpu.iota {dimensions = array<i32: 0>} : vector<8x8x1xi32>
    %c0_66 = arith.constant 0 : index
    %c0_67 = arith.constant 0 : index
    %82 = vector.load %arg4[%c0_66, %c0_67] : memref<8x1xi32, #tpu.memory_space<vmem>>, vector<8x1xi32>
    %83 = vector.shape_cast %82 : vector<8x1xi32> to vector<1x8x1xi32>
    %84 = vector.broadcast %83 : vector<1x8x1xi32> to vector<8x8x1xi32>
    %85 = arith.cmpi slt, %81, %84 : vector<8x8x1xi32>
    %cst_68 = arith.constant 0.000000e+00 : f32
    %86 = vector.broadcast %cst_68 : f32 to vector<8x8x1xf32>
    %87 = arith.select %85, %80, %86 : vector<8x8x1xi1>, vector<8x8x1xf32>
    %88 = vector.broadcast %87 : vector<8x8x1xf32> to vector<8x8x32xf32>
    %89 = arith.mulf %88, %36 : vector<8x8x32xf32>
    %cst_69 = arith.constant dense<0.000000e+00> : vector<8x32xf32>
    %90 = vector.multi_reduction <add>, %89, %cst_69 [0] : vector<8x8x32xf32> to vector<8x32xf32>
    %c0_70 = arith.constant 0 : index
    %c0_71 = arith.constant 0 : index
    %91 = vector.load %arg23[%c0_70, %c0_71] : memref<8x32xf32, #tpu.memory_space<vmem>>, vector<8x32xf32>
    tpu.vector_store %arg23[%c0_70, %c0_71], %90 {strides = array<i32>} : memref<8x32xf32, #tpu.memory_space<vmem>>, vector<8x32xf32>,
    return
  }
  func.func @transform_0(%arg0: i32, %arg1: memref<1xi32, #tpu.memory_space<smem>>) -> (i32, i32) {
    %c0_i32 = arith.constant 0 : i32
    %c0_i32_0 = arith.constant 0 : i32
    return %arg0, %c0_i32 : i32, i32
  }
  func.func @transform_1(%arg0: i32, %arg1: memref<1xi32, #tpu.memory_space<smem>>) -> (i32, i32, i32) {
    %c0_i32 = arith.constant 0 : i32
    %c0_i32_0 = arith.constant 0 : i32
    %c0_i32_1 = arith.constant 0 : i32
    return %c0_i32, %arg0, %c0_i32_0 : i32, i32, i32
  }
  func.func @transform_2(%arg0: i32, %arg1: memref<1xi32, #tpu.memory_space<smem>>) -> (i32, i32) {
    %c0_i32 = arith.constant 0 : i32
    %c0_i32_0 = arith.constant 0 : i32
    return %arg0, %c0_i32 : i32, i32
  }
  func.func @transform_3(%arg0: i32, %arg1: memref<1xi32, #tpu.memory_space<smem>>) -> (i32, i32) {
    %c0_i32 = arith.constant 0 : i32
    %c0_i32_0 = arith.constant 0 : i32
    %c0_i32_1 = arith.constant 0 : i32
    return %c0_i32, %c0_i32_0 : i32, i32
  }
  func.func @transform_4(%arg0: i32, %arg1: memref<1xi32, #tpu.memory_space<smem>>) -> (i32, i32) {
    %c0_i32 = arith.constant 0 : i32
    %c0_i32_0 = arith.constant 0 : i32
    %c0_i32_1 = arith.constant 0 : i32
    return %c0_i32, %c0_i32_0 : i32, i32
  }
  func.func @transform_5(%arg0: i32, %arg1: memref<1xi32, #tpu.memory_space<smem>>) -> (i32, i32) {
    %c0_i32 = arith.constant 0 : i32
    %c0_i32_0 = arith.constant 0 : i32
    %c0_i32_1 = arith.constant 0 : i32
    return %c0_i32, %c0_i32_0 : i32, i32
  }
  func.func @transform_6(%arg0: i32, %arg1: memref<1xi32, #tpu.memory_space<smem>>) -> (i32, i32) {
    %c0_i32 = arith.constant 0 : i32
    %c0_i32_0 = arith.constant 0 : i32
    %c0_i32_1 = arith.constant 0 : i32
    return %c0_i32, %c0_i32_0 : i32, i32
  }
  func.func @transform_7(%arg0: i32, %arg1: memref<1xi32, #tpu.memory_space<smem>>) -> (i32, i32) {
    %c0_i32 = arith.constant 0 : i32
    %c0_i32_0 = arith.constant 0 : i32
    %c0_i32_1 = arith.constant 0 : i32
    return %c0_i32, %c0_i32_0 : i32, i32
  }
  func.func @transform_8(%arg0: i32, %arg1: memref<1xi32, #tpu.memory_space<smem>>) -> (i32, i32) {
    %c0_i32 = arith.constant 0 : i32
    %c0_i32_0 = arith.constant 0 : i32
    %c0_i32_1 = arith.constant 0 : i32
    return %c0_i32, %c0_i32_0 : i32, i32
  }
  func.func @transform_9(%arg0: i32, %arg1: memref<1xi32, #tpu.memory_space<smem>>) -> (i32, i32) {
    %c0_i32 = arith.constant 0 : i32
    %c0_i32_0 = arith.constant 0 : i32
    %c0_i32_1 = arith.constant 0 : i32
    return %c0_i32, %c0_i32_0 : i32, i32
  }
  func.func @transform_10(%arg0: i32, %arg1: memref<1xi32, #tpu.memory_space<smem>>) -> (i32, i32) {
    %c0_i32 = arith.constant 0 : i32
    %c0_i32_0 = arith.constant 0 : i32
    %c0_i32_1 = arith.constant 0 : i32
    return %c0_i32, %c0_i32_0 : i32, i32
  }
  func.func @transform_11(%arg0: i32, %arg1: memref<1xi32, #tpu.memory_space<smem>>) -> (i32, i32) {
    %c0_i32 = arith.constant 0 : i32
    %c0_i32_0 = arith.constant 0 : i32
    %c0_i32_1 = arith.constant 0 : i32
    return %c0_i32, %c0_i32_0 : i32, i32
  }
  func.func @transform_12(%arg0: i32, %arg1: memref<1xi32, #tpu.memory_space<smem>>) -> (i32, i32) {
    %c0_i32 = arith.constant 0 : i32
    %c0_i32_0 = arith.constant 0 : i32
    %c0_i32_1 = arith.constant 0 : i32
    return %c0_i32, %c0_i32_0 : i32, i32
  }
  func.func @transform_13(%arg0: i32, %arg1: memref<1xi32, #tpu.memory_space<smem>>) -> (i32, i32) {
    %c0_i32 = arith.constant 0 : i32
    %c0_i32_0 = arith.constant 0 : i32
    %c0_i32_1 = arith.constant 0 : i32
    return %c0_i32, %c0_i32_0 : i32, i32
  }
  func.func @transform_14(%arg0: i32, %arg1: memref<1xi32, #tpu.memory_space<smem>>) -> (i32, i32) {
    %c0_i32 = arith.constant 0 : i32
    %c0_i32_0 = arith.constant 0 : i32
    %c0_i32_1 = arith.constant 0 : i32
    return %c0_i32, %c0_i32_0 : i32, i32
  }
  func.func @transform_15(%arg0: i32, %arg1: memref<1xi32, #tpu.memory_space<smem>>) -> (i32, i32) {
    %c0_i32 = arith.constant 0 : i32
    %c0_i32_0 = arith.constant 0 : i32
    %c0_i32_1 = arith.constant 0 : i32
    return %c0_i32, %c0_i32_0 : i32, i32
  }
  func.func @transform_16(%arg0: i32, %arg1: memref<1xi32, #tpu.memory_space<smem>>) -> (i32, i32) {
    %c0_i32 = arith.constant 0 : i32
    %c0_i32_0 = arith.constant 0 : i32
    %c0_i32_1 = arith.constant 0 : i32
    return %c0_i32, %c0_i32_0 : i32, i32
  }
  func.func @transform_17(%arg0: i32, %arg1: memref<1xi32, #tpu.memory_space<smem>>) -> (i32, i32) {
    %c0_i32 = arith.constant 0 : i32
    %c0_i32_0 = arith.constant 0 : i32
    %c0_i32_1 = arith.constant 0 : i32
    return %c0_i32, %c0_i32_0 : i32, i32
  }
  func.func @transform_18(%arg0: i32, %arg1: memref<1xi32, #tpu.memory_space<smem>>) -> (i32, i32) {
    %c0_i32 = arith.constant 0 : i32
    %c0_i32_0 = arith.constant 0 : i32
    %c0_i32_1 = arith.constant 0 : i32
    return %c0_i32, %c0_i32_0 : i32, i32
  }
  func.func @transform_19(%arg0: i32, %arg1: memref<1xi32, #tpu.memory_space<smem>>) -> (i32, i32) {
    %c0_i32 = arith.constant 0 : i32
    %c0_i32_0 = arith.constant 0 : i32
    %c0_i32_1 = arith.constant 0 : i32
    return %c0_i32, %c0_i32_0 : i32, i32
  }
  func.func @transform_20(%arg0: i32, %arg1: memref<1xi32, #tpu.memory_space<smem>>) -> (i32, i32) {
    %c0_i32 = arith.constant 0 : i32
    %c0_i32_0 = arith.constant 0 : i32
    %c0_i32_1 = arith.constant 0 : i32
    return %c0_i32, %c0_i32_0 : i32, i32
  }
  func.func @transform_21(%arg0: i32, %arg1: memref<1xi32, #tpu.memory_space<smem>>) -> (i32, i32) {
    %c0_i32 = arith.constant 0 : i32
    %c0_i32_0 = arith.constant 0 : i32
    return %arg0, %c0_i32 : i32, i32
  }
}

</mosaic_0001>

<llo_original>
// kernel: tpu_custom_call.1
$region0: #{tpu_custom_call.1}
  #allocation0 [shape = 'u32[]', space=smem, size = 0x4, offset = 0x4, fixed_abs, tag = 'smem constant byte address 0x4 - core index']
  #allocation1 [shape = 'u32[144,128]{1,0:T(1,128)}', space=vmem, size = 0x12000, scoped, tag = 'internal scratch']
  #allocation2 [shape = 'f32[8,8,32]{2,1,0:T(8,128)}', space=vmem, size = 0x8000, scoped, tag = 'scratch operand']
  #allocation3 [shape = 'f32[8,8,32]{2,1,0:T(8,128)}', space=vmem, size = 0x8000, scoped, tag = 'scratch operand']
  #allocation4 [shape = 'f32[8,8,32]{2,1,0:T(8,128)}', space=vmem, size = 0x8000, scoped, tag = 'scratch operand']
  #allocation5 [shape = 'f32[8,8,32]{2,1,0:T(8,128)}', space=vmem, size = 0x8000, scoped, tag = 'scratch operand']
  #allocation6 [shape = 's32[1]{0}', space=sflag, size = 0x4, scoped, tag = 'scoped memory for tpu_custom_call.1']
  #allocation7 [shape = 's32[1]{0:T(128)S(6)}', space=smem, size = 0x200, scoped, tag = 'prefetched SMEM operand 0']
  #allocation8 [shape = 'f32[1,1]{1,0:T(1,128)S(1)}', space=vmem, size = 0x200, scoped, tag = 'scoped memory for tpu_custom_call.1']
  %s0 = inlined_call_operand.<no memory space> [shape: s32[1], index: 0, kind: input, shape index: {}]
  %s1 = inlined_call_operand.hbm [shape: f32[8,32], index: 1, kind: input, shape index: {}]
  %s2 = inlined_call_operand.vmem [shape: f32[8,8,32], index: 2, kind: input, shape index: {}]
  %s3 = inlined_call_operand.vmem [shape: s32[8,1], index: 3, kind: input, shape index: {}]
  %s4 = inlined_call_operand.vmem [shape: f32[32,32], index: 4, kind: input, shape index: {}]
  %s5 = inlined_call_operand.hbm [shape: f32[32,32], index: 5, kind: input, shape index: {}]
  %s6 = inlined_call_operand.hbm [shape: f32[32,32], index: 6, kind: input, shape index: {}]
  %s7 = inlined_call_operand.hbm [shape: f32[32,32], index: 7, kind: input, shape index: {}]
  %s8 = inlined_call_operand.hbm [shape: f32[32,32], index: 8, kind: input, shape index: {}]
  %s9 = inlined_call_operand.hbm [shape: f32[32,32], index: 9, kind: input, shape index: {}]
  %s10 = inlined_call_operand.vmem [shape: f32[1,32], index: 10, kind: input, shape index: {}]
  %s11 = inlined_call_operand.hbm [shape: f32[1,32], index: 11, kind: input, shape index: {}]
  %s12 = inlined_call_operand.hbm [shape: f32[1,32], index: 12, kind: input, shape index: {}]
  %s13 = inlined_call_operand.vmem [shape: f32[1,32], index: 13, kind: input, shape index: {}]
  %s14 = inlined_call_operand.hbm [shape: f32[32,64], index: 14, kind: input, shape index: {}]
  %s15 = inlined_call_operand.hbm [shape: f32[32,64], index: 15, kind: input, shape index: {}]
  %s16 = inlined_call_operand.hbm [shape: f32[32,64], index: 16, kind: input, shape index: {}]
  %s17 = inlined_call_operand.vmem [shape: f32[1,64], index: 17, kind: input, shape index: {}]
  %s18 = inlined_call_operand.vmem [shape: f32[64,16], index: 18, kind: input, shape index: {}]
  %s19 = inlined_call_operand.vmem [shape: f32[1,16], index: 19, kind: input, shape index: {}]
  %s20 = inlined_call_operand.vmem [shape: f32[1,16], index: 20, kind: input, shape index: {}]
  %s21 = inlined_call_operand.<no memory space> [shape: f32[1,1], index: 21, kind: input, shape index: {}]
  %s22 = inlined_call_operand.hbm [shape: f32[8,32], index: 22, kind: output, shape index: {}]
  %s23 = sld [smem:[#allocation0]]
  $region145: #{tpu_custom_call.1} parent=0
    _
  %s25 = ssub.s32 1, %s23
  %s26 = scalar_select 0, %s25, %s23
  %27 = sst [smem:[#allocation7]] %s0
  %v28 = vstv %s21
  %29 = vst [vmem:[#allocation8] sm:$0x1] %v28
  $region1: #{tpu_custom_call.1} parent=0
    #allocation9 [shape = 'u8[4096]{0}', space=vmem, size = 0x1000, scoped, tag = 'input window, operand 1, single buffered']
    #allocation10 [shape = 's32[1]{0}', space=sflag, size = 0x4, scoped, tag = 'scoped memory for tpu_custom_call.1']
    #allocation11 [shape = 's32[1]{0}', space=sflag, size = 0x4, scoped, tag = 'scoped memory for tpu_custom_call.1']
    #allocation12 [shape = 'u8[16384]{0}', space=vmem, size = 0x4000, scoped, tag = 'input window, operand 5, single buffered']
    #allocation13 [shape = 's32[1]{0}', space=sflag, size = 0x4, scoped, tag = 'scoped memory for tpu_custom_call.1']
    #allocation14 [shape = 'u8[16384]{0}', space=vmem, size = 0x4000, scoped, tag = 'input window, operand 6, single buffered']
    #allocation15 [shape = 'u8[16384]{0}', space=vmem, size = 0x4000, scoped, tag = 'input window, operand 7, single buffered']
    #allocation16 [shape = 's32[1]{0}', space=sflag, size = 0x4, scoped, tag = 'scoped memory for tpu_custom_call.1']
    #allocation17 [shape = 'u8[16384]{0}', space=vmem, size = 0x4000, scoped, tag = 'input window, operand 8, single buffered']
    #allocation18 [shape = 'u8[16384]{0}', space=vmem, size = 0x4000, scoped, tag = 'input window, operand 9, single buffered']
    #allocation19 [shape = 's32[1]{0}', space=sflag, size = 0x4, scoped, tag = 'scoped memory for tpu_custom_call.1']
    #allocation20 [shape = 'u8[512]{0}', space=vmem, size = 0x400, scoped, tag = 'input window, operand 11, single buffered']
    #allocation21 [shape = 'u8[512]{0}', space=vmem, size = 0x400, scoped, tag = 'input window, operand 12, single buffered']
    #allocation22 [shape = 's32[1]{0}', space=sflag, size = 0x4, scoped, tag = 'scoped memory for tpu_custom_call.1']
    #allocation23 [shape = 'u8[16384]{0}', space=vmem, size = 0x4000, scoped, tag = 'input window, operand 14, single buffered']
    #allocation24 [shape = 'u8[16384]{0}', space=vmem, size = 0x4000, scoped, tag = 'input window, operand 15, single buffered']
    #allocation25 [shape = 's32[1]{0}', space=sflag, size = 0x4, scoped, tag = 'scoped memory for tpu_custom_call.1']
    #allocation26 [shape = 'u8[16384]{0}', space=vmem, size = 0x4000, scoped, tag = 'input window, operand 16, single buffered']
    #allocation27 [shape = 'u8[4096]{0}', space=vmem, size = 0x1000, scoped, tag = 'output window, operand 0, single buffered']
    %30 = vsyncpa [#allocation10], 0
    %31 = vsyncpa [#allocation13], 0
    %32 = vsyncpa [#allocation16], 0
    %33 = vsyncpa [#allocation19], 0
    %34 = vsyncpa [#allocation22], 0
    %35 = vsyncpa [#allocation25], 0
    %36 = vsyncpa [#allocation11], 0
    // Predicated region
    $region2: #{tpu_custom_call.1} parent=1 // pred_check
      _
    $region3: #{tpu_custom_call.1} parent=1 // pred_check_branch
      %38 = sbr.rel (0) target = $region5
    $region4: #{tpu_custom_call.1} parent=1 // pred_region
      %s40 = ssub.s32 128, 128
      %41 = vsyncadd [#allocation10], %s40
      %s43 = sshll.u32 [#allocation9], 4
      %s44 = int_to_ptr.vmem [resolvable:$true] %s43
      %46 = dma.hbm_to_vmem [thread:$0]  %s1, 128, %s44, [#allocation10]
    $region5: #{tpu_custom_call.1} parent=1 // pred_fallthru
      _
    // Predicated region
    $region6: #{tpu_custom_call.1} parent=1 // pred_check
      _
    $region7: #{tpu_custom_call.1} parent=1 // pred_check_branch
      %48 = sbr.rel (0) target = $region9
    $region8: #{tpu_custom_call.1} parent=1 // pred_region
      _
    $region9: #{tpu_custom_call.1} parent=1 // pred_fallthru
      _
    // Predicated region
    $region10: #{tpu_custom_call.1} parent=1 // pred_check
      _
    $region11: #{tpu_custom_call.1} parent=1 // pred_check_branch
      %50 = sbr.rel (0) target = $region13
    $region12: #{tpu_custom_call.1} parent=1 // pred_region
      _
    $region13: #{tpu_custom_call.1} parent=1 // pred_fallthru
      _
    // Predicated region
    $region14: #{tpu_custom_call.1} parent=1 // pred_check
      _
    $region15: #{tpu_custom_call.1} parent=1 // pred_check_branch
      %52 = sbr.rel (0) target = $region17
    $region16: #{tpu_custom_call.1} parent=1 // pred_region
      _
    $region17: #{tpu_custom_call.1} parent=1 // pred_fallthru
      _
    // Predicated region
    $region18: #{tpu_custom_call.1} parent=1 // pred_check
      _
    $region19: #{tpu_custom_call.1} parent=1 // pred_check_branch
      %54 = sbr.rel (0) target = $region21
    $region20: #{tpu_custom_call.1} parent=1 // pred_region
      %s56 = ssub.s32 512, 512
      %57 = vsyncadd [#allocation13], %s56
      %s58 = sshll.u32 [#allocation12], 4
      %s59 = int_to_ptr.vmem [resolvable:$true] %s58
      %64 = dma.hbm_to_vmem [thread:$0]  %s5, 512, %s59, [#allocation13], 128, 128, 8
    $region21: #{tpu_custom_call.1} parent=1 // pred_fallthru
      _
    // Predicated region
    $region22: #{tpu_custom_call.1} parent=1 // pred_check
      _
    $region23: #{tpu_custom_call.1} parent=1 // pred_check_branch
      %66 = sbr.rel (0) target = $region25
    $region24: #{tpu_custom_call.1} parent=1 // pred_region
      %s68 = ssub.s32 512, 512
      %69 = vsyncadd [#allocation13], %s68
      %s70 = sshll.u32 [#allocation14], 4
      %s71 = int_to_ptr.vmem [resolvable:$true] %s70
      %76 = dma.hbm_to_vmem [thread:$0]  %s6, 512, %s71, [#allocation13], 128, 128, 8
    $region25: #{tpu_custom_call.1} parent=1 // pred_fallthru
      _
    // Predicated region
    $region26: #{tpu_custom_call.1} parent=1 // pred_check
      _
    $region27: #{tpu_custom_call.1} parent=1 // pred_check_branch
      %78 = sbr.rel (0) target = $region29
    $region28: #{tpu_custom_call.1} parent=1 // pred_region
      %s80 = ssub.s32 512, 512
      %81 = vsyncadd [#allocation16], %s80
      %s82 = sshll.u32 [#allocation15], 4
      %s83 = int_to_ptr.vmem [resolvable:$true] %s82
      %88 = dma.hbm_to_vmem [thread:$0]  %s7, 512, %s83, [#allocation16], 128, 128, 8
    $region29: #{tpu_custom_call.1} parent=1 // pred_fallthru
      _
    // Predicated region
    $region30: #{tpu_custom_call.1} parent=1 // pred_check
      _
    $region31: #{tpu_custom_call.1} parent=1 // pred_check_branch
      %90 = sbr.rel (0) target = $region33
    $region32: #{tpu_custom_call.1} parent=1 // pred_region
      %s92 = ssub.s32 512, 512
      %93 = vsyncadd [#allocation16], %s92
      %s94 = sshll.u32 [#allocation17], 4
      %s95 = int_to_ptr.vmem [resolvable:$true] %s94
      %100 = dma.hbm_to_vmem [thread:$0]  %s8, 512, %s95, [#allocation16], 128, 128, 8
    $region33: #{tpu_custom_call.1} parent=1 // pred_fallthru
      _
    // Predicated region
    $region34: #{tpu_custom_call.1} parent=1 // pred_check
      _
    $region35: #{tpu_custom_call.1} parent=1 // pred_check_branch
      %102 = sbr.rel (0) target = $region37
    $region36: #{tpu_custom_call.1} parent=1 // pred_region
      %s104 = ssub.s32 512, 512
      %105 = vsyncadd [#allocation19], %s104
      %s106 = sshll.u32 [#allocation18], 4
      %s107 = int_to_ptr.vmem [resolvable:$true] %s106
      %112 = dma.hbm_to_vmem [thread:$0]  %s9, 512, %s107, [#allocation19], 128, 128, 8
    $region37: #{tpu_custom_call.1} parent=1 // pred_fallthru
      _
    // Predicated region
    $region38: #{tpu_custom_call.1} parent=1 // pred_check
      _
    $region39: #{tpu_custom_call.1} parent=1 // pred_check_branch
      %114 = sbr.rel (0) target = $region41
    $region40: #{tpu_custom_call.1} parent=1 // pred_region
      _
    $region41: #{tpu_custom_call.1} parent=1 // pred_fallthru
      _
    // Predicated region
    $region42: #{tpu_custom_call.1} parent=1 // pred_check
      _
    $region43: #{tpu_custom_call.1} parent=1 // pred_check_branch
      %116 = sbr.rel (0) target = $region45
    $region44: #{tpu_custom_call.1} parent=1 // pred_region
      %s118 = ssub.s32 16, 16
      %119 = vsyncadd [#allocation19], %s118
      %s121 = sshll.u32 [#allocation20], 4
      %s122 = int_to_ptr.vmem [resolvable:$true] %s121
      %124 = dma.hbm_to_vmem [thread:$0]  %s11, 16, %s122, [#allocation19]
    $region45: #{tpu_custom_call.1} parent=1 // pred_fallthru
      _
    // Predicated region
    $region46: #{tpu_custom_call.1} parent=1 // pred_check
      _
    $region47: #{tpu_custom_call.1} parent=1 // pred_check_branch
      %126 = sbr.rel (0) target = $region49
    $region48: #{tpu_custom_call.1} parent=1 // pred_region
      %s128 = ssub.s32 16, 16
      %129 = vsyncadd [#allocation22], %s128
      %s131 = sshll.u32 [#allocation21], 4
      %s132 = int_to_ptr.vmem [resolvable:$true] %s131
      %134 = dma.hbm_to_vmem [thread:$0]  %s12, 16, %s132, [#allocation22]
    $region49: #{tpu_custom_call.1} parent=1 // pred_fallthru
      _
    // Predicated region
    $region50: #{tpu_custom_call.1} parent=1 // pred_check
      _
    $region51: #{tpu_custom_call.1} parent=1 // pred_check_branch
      %136 = sbr.rel (0) target = $region53
    $region52: #{tpu_custom_call.1} parent=1 // pred_region
      _
    $region53: #{tpu_custom_call.1} parent=1 // pred_fallthru
      _
    // Predicated region
    $region54: #{tpu_custom_call.1} parent=1 // pred_check
      _
    $region55: #{tpu_custom_call.1} parent=1 // pred_check_branch
      %138 = sbr.rel (0) target = $region57
    $region56: #{tpu_custom_call.1} parent=1 // pred_region
      %s140 = ssub.s32 512, 512
      %141 = vsyncadd [#allocation22], %s140
      %s142 = sshll.u32 [#allocation23], 4
      %s143 = int_to_ptr.vmem [resolvable:$true] %s142
      %148 = dma.hbm_to_vmem [thread:$0]  %s14, 512, %s143, [#allocation22], 128, 128, 8
    $region57: #{tpu_custom_call.1} parent=1 // pred_fallthru
      _
    // Predicated region
    $region58: #{tpu_custom_call.1} parent=1 // pred_check
      _
    $region59: #{tpu_custom_call.1} parent=1 // pred_check_branch
      %150 = sbr.rel (0) target = $region61
    $region60: #{tpu_custom_call.1} parent=1 // pred_region
      %s152 = ssub.s32 512, 512
      %153 = vsyncadd [#allocation25], %s152
      %s154 = sshll.u32 [#allocation24], 4
      %s155 = int_to_ptr.vmem [resolvable:$true] %s154
      %160 = dma.hbm_to_vmem [thread:$0]  %s15, 512, %s155, [#allocation25], 128, 128, 8
    $region61: #{tpu_custom_call.1} parent=1 // pred_fallthru
      _
    // Predicated region
    $region62: #{tpu_custom_call.1} parent=1 // pred_check
      _
    $region63: #{tpu_custom_call.1} parent=1 // pred_check_branch
      %162 = sbr.rel (0) target = $region65
    $region64: #{tpu_custom_call.1} parent=1 // pred_region
      %s164 = ssub.s32 512, 512
      %165 = vsyncadd [#allocation25], %s164
      %s166 = sshll.u32 [#allocation26], 4
      %s167 = int_to_ptr.vmem [resolvable:$true] %s166
      %172 = dma.hbm_to_vmem [thread:$0]  %s16, 512, %s167, [#allocation25], 128, 128, 8
    $region65: #{tpu_custom_call.1} parent=1 // pred_fallthru
      _
    // Predicated region
    $region66: #{tpu_custom_call.1} parent=1 // pred_check
      _
    $region67: #{tpu_custom_call.1} parent=1 // pred_check_branch
      %174 = sbr.rel (0) target = $region69
    $region68: #{tpu_custom_call.1} parent=1 // pred_region
      _
    $region69: #{tpu_custom_call.1} parent=1 // pred_fallthru
      _
    // Predicated region
    $region70: #{tpu_custom_call.1} parent=1 // pred_check
      _
    $region71: #{tpu_custom_call.1} parent=1 // pred_check_branch
      %176 = sbr.rel (0) target = $region73
    $region72: #{tpu_custom_call.1} parent=1 // pred_region
      _
    $region73: #{tpu_custom_call.1} parent=1 // pred_fallthru
      _
    // Predicated region
    $region74: #{tpu_custom_call.1} parent=1 // pred_check
      _
    $region75: #{tpu_custom_call.1} parent=1 // pred_check_branch
      %178 = sbr.rel (0) target = $region77
    $region76: #{tpu_custom_call.1} parent=1 // pred_region
      _
    $region77: #{tpu_custom_call.1} parent=1 // pred_fallthru
      _
    // Predicated region
    $region78: #{tpu_custom_call.1} parent=1 // pred_check
      _
    $region79: #{tpu_custom_call.1} parent=1 // pred_check_branch
      %180 = sbr.rel (0) target = $region81
    $region80: #{tpu_custom_call.1} parent=1 // pred_region
      _
    $region81: #{tpu_custom_call.1} parent=1 // pred_fallthru
      _
    // Predicated region
    $region82: #{tpu_custom_call.1} parent=1 // pred_check
      _
    $region83: #{tpu_custom_call.1} parent=1 // pred_check_branch
      %182 = sbr.rel (0) target = $region85
    $region84: #{tpu_custom_call.1} parent=1 // pred_region
      _
    $region85: #{tpu_custom_call.1} parent=1 // pred_fallthru
      _
    // Predicated region
    $region86: #{tpu_custom_call.1} parent=1 // pred_check
      _
    $region87: #{tpu_custom_call.1} parent=1 // pred_check_branch
      %184 = sbr.rel (0) target = $region89
    $region88: #{tpu_custom_call.1} parent=1 // pred_region
      %185 = dma.done [#allocation10], 128
    $region89: #{tpu_custom_call.1} parent=1 // pred_fallthru
      _
    // Predicated region
    $region90: #{tpu_custom_call.1} parent=1 // pred_check
      _
    $region91: #{tpu_custom_call.1} parent=1 // pred_check_branch
      %187 = sbr.rel (0) target = $region93
    $region92: #{tpu_custom_call.1} parent=1 // pred_region
      %188 = dma.done [#allocation13], 512
    $region93: #{tpu_custom_call.1} parent=1 // pred_fallthru
      _
    // Predicated region
    $region94: #{tpu_custom_call.1} parent=1 // pred_check
      _
    $region95: #{tpu_custom_call.1} parent=1 // pred_check_branch
      %190 = sbr.rel (0) target = $region97
    $region96: #{tpu_custom_call.1} parent=1 // pred_region
      %191 = dma.done [#allocation13], 512
    $region97: #{tpu_custom_call.1} parent=1 // pred_fallthru
      _
    // Predicated region
    $region98: #{tpu_custom_call.1} parent=1 // pred_check
      _
    $region99: #{tpu_custom_call.1} parent=1 // pred_check_branch
      %193 = sbr.rel (0) target = $region101
    $region100: #{tpu_custom_call.1} parent=1 // pred_region
      %194 = dma.done [#allocation16], 512
    $region101: #{tpu_custom_call.1} parent=1 // pred_fallthru
      _
    // Predicated region
    $region102: #{tpu_custom_call.1} parent=1 // pred_check
      _
    $region103: #{tpu_custom_call.1} parent=1 // pred_check_branch
      %196 = sbr.rel (0) target = $region105
    $region104: #{tpu_custom_call.1} parent=1 // pred_region
      %197 = dma.done [#allocation16], 512
    $region105: #{tpu_custom_call.1} parent=1 // pred_fallthru
      _
    // Predicated region
    $region106: #{tpu_custom_call.1} parent=1 // pred_check
      _
    $region107: #{tpu_custom_call.1} parent=1 // pred_check_branch
      %199 = sbr.rel (0) target = $region109
    $region108: #{tpu_custom_call.1} parent=1 // pred_region
      %200 = dma.done [#allocation19], 512
    $region109: #{tpu_custom_call.1} parent=1 // pred_fallthru
      _
    // Predicated region
    $region110: #{tpu_custom_call.1} parent=1 // pred_check
      _
    $region111: #{tpu_custom_call.1} parent=1 // pred_check_branch
      %202 = sbr.rel (0) target = $region113
    $region112: #{tpu_custom_call.1} parent=1 // pred_region
      %203 = dma.done [#allocation19], 16
    $region113: #{tpu_custom_call.1} parent=1 // pred_fallthru
      _
    // Predicated region
    $region114: #{tpu_custom_call.1} parent=1 // pred_check
      _
    $region115: #{tpu_custom_call.1} parent=1 // pred_check_branch
      %205 = sbr.rel (0) target = $region117
    $region116: #{tpu_custom_call.1} parent=1 // pred_region
      %206 = dma.done [#allocation22], 16
    $region117: #{tpu_custom_call.1} parent=1 // pred_fallthru
      _
    // Predicated region
    $region118: #{tpu_custom_call.1} parent=1 // pred_check
      _
    $region119: #{tpu_custom_call.1} parent=1 // pred_check_branch
      %208 = sbr.rel (0) target = $region121
    $region120: #{tpu_custom_call.1} parent=1 // pred_region
      %209 = dma.done [#allocation22], 512
    $region121: #{tpu_custom_call.1} parent=1 // pred_fallthru
      _
    // Predicated region
    $region122: #{tpu_custom_call.1} parent=1 // pred_check
      _
    $region123: #{tpu_custom_call.1} parent=1 // pred_check_branch
      %211 = sbr.rel (0) target = $region125
    $region124: #{tpu_custom_call.1} parent=1 // pred_region
      %212 = dma.done [#allocation25], 512
    $region125: #{tpu_custom_call.1} parent=1 // pred_fallthru
      _
    // Predicated region
    $region126: #{tpu_custom_call.1} parent=1 // pred_check
      _
    $region127: #{tpu_custom_call.1} parent=1 // pred_check_branch
      %214 = sbr.rel (0) target = $region129
    $region128: #{tpu_custom_call.1} parent=1 // pred_region
      %215 = dma.done [#allocation25], 512
    $region129: #{tpu_custom_call.1} parent=1 // pred_fallthru
      _
    %v216 = vld [vmem:[%s2] sm:$0xff]
    %v217 = vld [vmem:[%s2 + $0x8] sm:$0xff]
    %v218 = vld [vmem:[%s2 + $0x10] sm:$0xff]
    %v219 = vld [vmem:[%s2 + $0x18] sm:$0xff]
    %v220 = vld [vmem:[%s2 + $0x20] sm:$0xff]
    %v221 = vld [vmem:[%s2 + $0x28] sm:$0xff]
    %v222 = vld [vmem:[%s2 + $0x30] sm:$0xff]
    %v223 = vld [vmem:[%s2 + $0x38] sm:$0xff]
    %v224 = vld [vmem:[%s4] sm:$0xff]
    %v225 = vld [vmem:[%s4 + $0x8] sm:$0xff]
    %v226 = vld [vmem:[%s4 + $0x10] sm:$0xff]
    %v227 = vld [vmem:[%s4 + $0x18] sm:$0xff]
    %v228 = vld [vmem:[%s10] sm:$0x1]
    %v230 = vlaneseq
    %v231 = vshrl.u32 %v230, 7
    %v232 = vsub.s32 0, %v231
    %v233 = vrot.slane %v228, %v232
    %vm235 = vcmask 261120
    %v237 = vsel %vm235, %v216, 0
    %v240 = vsel %vm235, %v217, 0
    %v243 = vsel %vm235, %v218, 0
    %v246 = vsel %vm235, %v219, 0
    %v249 = vsel %vm235, %v220, 0
    %v252 = vsel %vm235, %v221, 0
    %v255 = vsel %vm235, %v222, 0
    %v258 = vsel %vm235, %v223, 0
    %260 = vmatprep.subr.mxu0 0.0
    %261 = vmatpush1.msra.mxu0 0.0
    %262 = vmatprep.subr.mxu0 0.0
    %263 = vmatpush1.msra.mxu0 0.0
    %264 = vmatprep.subr.mxu0 0.0
    %265 = vmatpush1.msra.mxu0 0.0
    %266 = vmatprep.subr.mxu0 0.0
    %267 = vmatpush1.msra.mxu0 0.0
    %268 = vmatprep.subr.mxu0 0.0
    %269 = vmatpush1.msra.mxu0 0.0
    %270 = vmatprep.subr.mxu0 0.0
    %271 = vmatpush1.msra.mxu0 0.0
    %272 = vmatprep.subr.mxu0 0.0
    %273 = vmatpush1.msra.mxu0 0.0
    %274 = vmatprep.subr.mxu0 0.0
    %275 = vmatpush1.msra.mxu0 0.0
    %276 = vmatprep.subr.mxu0 0.0
    %277 = vmatpush1.msra.mxu0 0.0
    %278 = vmatprep.subr.mxu0 0.0
    %279 = vmatpush1.msra.mxu0 0.0
    %280 = vmatprep.subr.mxu0 0.0
    %281 = vmatpush1.msra.mxu0 0.0
    %282 = vmatprep.subr.mxu0 0.0
    %283 = vmatpush1.msra.mxu0 0.0
    %284 = vmatprep.subr.mxu0 0.0
    %285 = vmatpush1.msra.mxu0 %v227
    %286 = vmatprep.subr.mxu0 0.0
    %287 = vmatpush1.msra.mxu0 %v226
    %288 = vmatprep.subr.mxu0 0.0
    %289 = vmatpush1.msra.mxu0 %v225
    %290 = vmatprep.subr.mxu0 0.0
    %291 = vmatpush1.msra.mxu0 %v224
    %292 = vmatprep.subr.mxu0 0.0
    %293 = vmatpush2.msra.mxu0 0.0
    %294 = vmatprep.subr.mxu0 0.0
    %295 = vmatpush2.msra.mxu0 0.0
    %296 = vmatprep.subr.mxu0 0.0
    %297 = vmatpush2.msra.mxu0 0.0
    %298 = vmatprep.subr.mxu0 0.0
    %299 = vmatpush2.msra.mxu0 0.0
    %300 = vmatprep.subr.mxu0 0.0
    %301 = vmatpush2.msra.mxu0 0.0
    %302 = vmatprep.subr.mxu0 0.0
    %303 = vmatpush2.msra.mxu0 0.0
    %304 = vmatprep.subr.mxu0 0.0
    %305 = vmatpush2.msra.mxu0 0.0
    %306 = vmatprep.subr.mxu0 0.0
    %307 = vmatpush2.msra.mxu0 0.0
    %308 = vmatprep.subr.mxu0 0.0
    %309 = vmatpush2.msra.mxu0 0.0
    %310 = vmatprep.subr.mxu0 0.0
    %311 = vmatpush2.msra.mxu0 0.0
    %312 = vmatprep.subr.mxu0 0.0
    %313 = vmatpush2.msra.mxu0 0.0
    %314 = vmatprep.subr.mxu0 0.0
    %315 = vmatpush2.msra.mxu0 0.0
    %316 = vmatprep.subr.mxu0 0.0
    %317 = vmatpush2.msra.mxu0 0.0
    %318 = vmatprep.subr.mxu0 0.0
    %319 = vmatpush2.msra.mxu0 0.0
    %320 = vmatprep.subr.mxu0 0.0
    %321 = vmatpush2.msra.mxu0 0.0
    %322 = vmatprep.subr.mxu0 0.0
    %323 = vmatpush2.msra.mxu0 0.0
    %324 = vmatprep.mubr.f32.mxu0 0.0
    %325 = vmatmul.mubr.f32.gmra.mxu0 %v237
    %v326 = vpop.f32.mrf.mxu0
    %v327 = vadd.f32 %v233, %v326
    %v328 = vpop.f32.mrf.mxu0
    %329 = vmatprep.mubr.f32.mxu0 0.0
    %330 = vmatmul.mubr.f32.gmra.mxu0 %v240
    %v331 = vpop.f32.mrf.mxu0
    %v332 = vadd.f32 %v233, %v331
    %v333 = vpop.f32.mrf.mxu0
    %334 = vmatprep.mubr.f32.mxu0 0.0
    %335 = vmatmul.mubr.f32.gmra.mxu0 %v243
    %v336 = vpop.f32.mrf.mxu0
    %v337 = vadd.f32 %v233, %v336
    %v338 = vpop.f32.mrf.mxu0
    %339 = vmatprep.mubr.f32.mxu0 0.0
    %340 = vmatmul.mubr.f32.gmra.mxu0 %v246
    %v341 = vpop.f32.mrf.mxu0
    %v342 = vadd.f32 %v233, %v341
    %v343 = vpop.f32.mrf.mxu0
    %344 = vmatprep.mubr.f32.mxu0 0.0
    %345 = vmatmul.mubr.f32.gmra.mxu0 %v249
    %v346 = vpop.f32.mrf.mxu0
    %v347 = vadd.f32 %v233, %v346
    %v348 = vpop.f32.mrf.mxu0
    %349 = vmatprep.mubr.f32.mxu0 0.0
    %350 = vmatmul.mubr.f32.gmra.mxu0 %v252
    %v351 = vpop.f32.mrf.mxu0
    %v352 = vadd.f32 %v233, %v351
    %v353 = vpop.f32.mrf.mxu0
    %354 = vmatprep.mubr.f32.mxu0 0.0
    %355 = vmatmul.mubr.f32.gmra.mxu0 %v255
    %v356 = vpop.f32.mrf.mxu0
    %v357 = vadd.f32 %v233, %v356
    %v358 = vpop.f32.mrf.mxu0
    %359 = vmatprep.mubr.f32.mxu0 0.0
    %360 = vmatmul.mubr.f32.gmra.mxu0 %v258
    %v361 = vpop.f32.mrf.mxu0
    %v362 = vadd.f32 %v233, %v361
    %v363 = vpop.f32.mrf.mxu0
    %364 = vdwg.mxu0
    %365 = vst.msk [vmem:[#allocation2] sm:$0xff] %vm235, %v327
    %366 = vst.msk [vmem:[#allocation2 + $0x8] sm:$0xff] %vm235, %v332
    %367 = vst.msk [vmem:[#allocation2 + $0x10] sm:$0xff] %vm235, %v337
    %368 = vst.msk [vmem:[#allocation2 + $0x18] sm:$0xff] %vm235, %v342
    %369 = vst.msk [vmem:[#allocation2 + $0x20] sm:$0xff] %vm235, %v347
    %370 = vst.msk [vmem:[#allocation2 + $0x28] sm:$0xff] %vm235, %v352
    %371 = vst.msk [vmem:[#allocation2 + $0x30] sm:$0xff] %vm235, %v357
    %372 = vst.msk [vmem:[#allocation2 + $0x38] sm:$0xff] %vm235, %v362
    %v373 = vld [vmem:[#allocation12] sm:$0xff]
    %v374 = vld [vmem:[#allocation12 + $0x8] sm:$0xff]
    %v375 = vld [vmem:[#allocation12 + $0x10] sm:$0xff]
    %v376 = vld [vmem:[#allocation12 + $0x18] sm:$0xff]
    %v377 = vld [vmem:[#allocation20] sm:$0x1]
    %v379 = vlaneseq
    %v380 = vshrl.u32 %v379, 7
    %v381 = vsub.s32 0, %v380
    %v382 = vrot.slane %v377, %v381
    %384 = vmatprep.subr.mxu0 0.0
    %385 = vmatpush1.msra.mxu0 0.0
    %386 = vmatprep.subr.mxu0 0.0
    %387 = vmatpush1.msra.mxu0 0.0
    %388 = vmatprep.subr.mxu0 0.0
    %389 = vmatpush1.msra.mxu0 0.0
    %390 = vmatprep.subr.mxu0 0.0
    %391 = vmatpush1.msra.mxu0 0.0
    %392 = vmatprep.subr.mxu0 0.0
    %393 = vmatpush1.msra.mxu0 0.0
    %394 = vmatprep.subr.mxu0 0.0
    %395 = vmatpush1.msra.mxu0 0.0
    %396 = vmatprep.subr.mxu0 0.0
    %397 = vmatpush1.msra.mxu0 0.0
    %398 = vmatprep.subr.mxu0 0.0
    %399 = vmatpush1.msra.mxu0 0.0
    %400 = vmatprep.subr.mxu0 0.0
    %401 = vmatpush1.msra.mxu0 0.0
    %402 = vmatprep.subr.mxu0 0.0
    %403 = vmatpush1.msra.mxu0 0.0
    %404 = vmatprep.subr.mxu0 0.0
    %405 = vmatpush1.msra.mxu0 0.0
    %406 = vmatprep.subr.mxu0 0.0
    %407 = vmatpush1.msra.mxu0 0.0
    %408 = vmatprep.subr.mxu0 0.0
    %409 = vmatpush1.msra.mxu0 %v376
    %410 = vmatprep.subr.mxu0 0.0
    %411 = vmatpush1.msra.mxu0 %v375
    %412 = vmatprep.subr.mxu0 0.0
    %413 = vmatpush1.msra.mxu0 %v374
    %414 = vmatprep.subr.mxu0 0.0
    %415 = vmatpush1.msra.mxu0 %v373
    %416 = vmatprep.subr.mxu0 0.0
    %417 = vmatpush2.msra.mxu0 0.0
    %418 = vmatprep.subr.mxu0 0.0
    %419 = vmatpush2.msra.mxu0 0.0
    %420 = vmatprep.subr.mxu0 0.0
    %421 = vmatpush2.msra.mxu0 0.0
    %422 = vmatprep.subr.mxu0 0.0
    %423 = vmatpush2.msra.mxu0 0.0
    %424 = vmatprep.subr.mxu0 0.0
    %425 = vmatpush2.msra.mxu0 0.0
    %426 = vmatprep.subr.mxu0 0.0
    %427 = vmatpush2.msra.mxu0 0.0
    %428 = vmatprep.subr.mxu0 0.0
    %429 = vmatpush2.msra.mxu0 0.0
    %430 = vmatprep.subr.mxu0 0.0
    %431 = vmatpush2.msra.mxu0 0.0
    %432 = vmatprep.subr.mxu0 0.0
    %433 = vmatpush2.msra.mxu0 0.0
    %434 = vmatprep.subr.mxu0 0.0
    %435 = vmatpush2.msra.mxu0 0.0
    %436 = vmatprep.subr.mxu0 0.0
    %437 = vmatpush2.msra.mxu0 0.0
    %438 = vmatprep.subr.mxu0 0.0
    %439 = vmatpush2.msra.mxu0 0.0
    %440 = vmatprep.subr.mxu0 0.0
    %441 = vmatpush2.msra.mxu0 0.0
    %442 = vmatprep.subr.mxu0 0.0
    %443 = vmatpush2.msra.mxu0 0.0
    %444 = vmatprep.subr.mxu0 0.0
    %445 = vmatpush2.msra.mxu0 0.0
    %446 = vmatprep.subr.mxu0 0.0
    %447 = vmatpush2.msra.mxu0 0.0
    %448 = vmatprep.mubr.f32.mxu0 0.0
    %449 = vmatmul.mubr.f32.gmra.mxu0 %v237
    %v450 = vpop.f32.mrf.mxu0
    %v451 = vadd.f32 %v382, %v450
    %v452 = vpop.f32.mrf.mxu0
    %453 = vmatprep.mubr.f32.mxu0 0.0
    %454 = vmatmul.mubr.f32.gmra.mxu0 %v240
    %v455 = vpop.f32.mrf.mxu0
    %v456 = vadd.f32 %v382, %v455
    %v457 = vpop.f32.mrf.mxu0
    %458 = vmatprep.mubr.f32.mxu0 0.0
    %459 = vmatmul.mubr.f32.gmra.mxu0 %v243
    %v460 = vpop.f32.mrf.mxu0
    %v461 = vadd.f32 %v382, %v460
    %v462 = vpop.f32.mrf.mxu0
    %463 = vmatprep.mubr.f32.mxu0 0.0
    %464 = vmatmul.mubr.f32.gmra.mxu0 %v246
    %v465 = vpop.f32.mrf.mxu0
    %v466 = vadd.f32 %v382, %v465
    %v467 = vpop.f32.mrf.mxu0
    %468 = vmatprep.mubr.f32.mxu0 0.0
    %469 = vmatmul.mubr.f32.gmra.mxu0 %v249
    %v470 = vpop.f32.mrf.mxu0
    %v471 = vadd.f32 %v382, %v470
    %v472 = vpop.f32.mrf.mxu0
    %473 = vmatprep.mubr.f32.mxu0 0.0
    %474 = vmatmul.mubr.f32.gmra.mxu0 %v252
    %v475 = vpop.f32.mrf.mxu0
    %v476 = vadd.f32 %v382, %v475
    %v477 = vpop.f32.mrf.mxu0
    %478 = vmatprep.mubr.f32.mxu0 0.0
    %479 = vmatmul.mubr.f32.gmra.mxu0 %v255
    %v480 = vpop.f32.mrf.mxu0
    %v481 = vadd.f32 %v382, %v480
    %v482 = vpop.f32.mrf.mxu0
    %483 = vmatprep.mubr.f32.mxu0 0.0
    %484 = vmatmul.mubr.f32.gmra.mxu0 %v258
    %v485 = vpop.f32.mrf.mxu0
    %v486 = vadd.f32 %v382, %v485
    %v487 = vpop.f32.mrf.mxu0
    %488 = vdwg.mxu0
    %489 = vst.msk [vmem:[#allocation3] sm:$0xff] %vm235, %v451
    %490 = vst.msk [vmem:[#allocation3 + $0x8] sm:$0xff] %vm235, %v456
    %491 = vst.msk [vmem:[#allocation3 + $0x10] sm:$0xff] %vm235, %v461
    %492 = vst.msk [vmem:[#allocation3 + $0x18] sm:$0xff] %vm235, %v466
    %493 = vst.msk [vmem:[#allocation3 + $0x20] sm:$0xff] %vm235, %v471
    %494 = vst.msk [vmem:[#allocation3 + $0x28] sm:$0xff] %vm235, %v476
    %495 = vst.msk [vmem:[#allocation3 + $0x30] sm:$0xff] %vm235, %v481
    %496 = vst.msk [vmem:[#allocation3 + $0x38] sm:$0xff] %vm235, %v486
    %v497 = vld [vmem:[#allocation14] sm:$0xff]
    %v498 = vld [vmem:[#allocation14 + $0x8] sm:$0xff]
    %v499 = vld [vmem:[#allocation14 + $0x10] sm:$0xff]
    %v500 = vld [vmem:[#allocation14 + $0x18] sm:$0xff]
    %v501 = vld [vmem:[#allocation21] sm:$0x1]
    %v503 = vlaneseq
    %v504 = vshrl.u32 %v503, 7
    %v505 = vsub.s32 0, %v504
    %v506 = vrot.slane %v501, %v505
    %508 = vmatprep.subr.mxu0 0.0
    %509 = vmatpush1.msra.mxu0 0.0
    %510 = vmatprep.subr.mxu0 0.0
    %511 = vmatpush1.msra.mxu0 0.0
    %512 = vmatprep.subr.mxu0 0.0
    %513 = vmatpush1.msra.mxu0 0.0
    %514 = vmatprep.subr.mxu0 0.0
    %515 = vmatpush1.msra.mxu0 0.0
    %516 = vmatprep.subr.mxu0 0.0
    %517 = vmatpush1.msra.mxu0 0.0
    %518 = vmatprep.subr.mxu0 0.0
    %519 = vmatpush1.msra.mxu0 0.0
    %520 = vmatprep.subr.mxu0 0.0
    %521 = vmatpush1.msra.mxu0 0.0
    %522 = vmatprep.subr.mxu0 0.0
    %523 = vmatpush1.msra.mxu0 0.0
    %524 = vmatprep.subr.mxu0 0.0
    %525 = vmatpush1.msra.mxu0 0.0
    %526 = vmatprep.subr.mxu0 0.0
    %527 = vmatpush1.msra.mxu0 0.0
    %528 = vmatprep.subr.mxu0 0.0
    %529 = vmatpush1.msra.mxu0 0.0
    %530 = vmatprep.subr.mxu0 0.0
    %531 = vmatpush1.msra.mxu0 0.0
    %532 = vmatprep.subr.mxu0 0.0
    %533 = vmatpush1.msra.mxu0 %v500
    %534 = vmatprep.subr.mxu0 0.0
    %535 = vmatpush1.msra.mxu0 %v499
    %536 = vmatprep.subr.mxu0 0.0
    %537 = vmatpush1.msra.mxu0 %v498
    %538 = vmatprep.subr.mxu0 0.0
    %539 = vmatpush1.msra.mxu0 %v497
    %540 = vmatprep.subr.mxu0 0.0
    %541 = vmatpush2.msra.mxu0 0.0
    %542 = vmatprep.subr.mxu0 0.0
    %543 = vmatpush2.msra.mxu0 0.0
    %544 = vmatprep.subr.mxu0 0.0
    %545 = vmatpush2.msra.mxu0 0.0
    %546 = vmatprep.subr.mxu0 0.0
    %547 = vmatpush2.msra.mxu0 0.0
    %548 = vmatprep.subr.mxu0 0.0
    %549 = vmatpush2.msra.mxu0 0.0
    %550 = vmatprep.subr.mxu0 0.0
    %551 = vmatpush2.msra.mxu0 0.0
    %552 = vmatprep.subr.mxu0 0.0
    %553 = vmatpush2.msra.mxu0 0.0
    %554 = vmatprep.subr.mxu0 0.0
    %555 = vmatpush2.msra.mxu0 0.0
    %556 = vmatprep.subr.mxu0 0.0
    %557 = vmatpush2.msra.mxu0 0.0
    %558 = vmatprep.subr.mxu0 0.0
    %559 = vmatpush2.msra.mxu0 0.0
    %560 = vmatprep.subr.mxu0 0.0
    %561 = vmatpush2.msra.mxu0 0.0
    %562 = vmatprep.subr.mxu0 0.0
    %563 = vmatpush2.msra.mxu0 0.0
    %564 = vmatprep.subr.mxu0 0.0
    %565 = vmatpush2.msra.mxu0 0.0
    %566 = vmatprep.subr.mxu0 0.0
    %567 = vmatpush2.msra.mxu0 0.0
    %568 = vmatprep.subr.mxu0 0.0
    %569 = vmatpush2.msra.mxu0 0.0
    %570 = vmatprep.subr.mxu0 0.0
    %571 = vmatpush2.msra.mxu0 0.0
    %572 = vmatprep.mubr.f32.mxu0 0.0
    %573 = vmatmul.mubr.f32.gmra.mxu0 %v237
    %v574 = vpop.f32.mrf.mxu0
    %v575 = vadd.f32 %v506, %v574
    %v576 = vpop.f32.mrf.mxu0
    %577 = vmatprep.mubr.f32.mxu0 0.0
    %578 = vmatmul.mubr.f32.gmra.mxu0 %v240
    %v579 = vpop.f32.mrf.mxu0
    %v580 = vadd.f32 %v506, %v579
    %v581 = vpop.f32.mrf.mxu0
    %582 = vmatprep.mubr.f32.mxu0 0.0
    %583 = vmatmul.mubr.f32.gmra.mxu0 %v243
    %v584 = vpop.f32.mrf.mxu0
    %v585 = vadd.f32 %v506, %v584
    %v586 = vpop.f32.mrf.mxu0
    %587 = vmatprep.mubr.f32.mxu0 0.0
    %588 = vmatmul.mubr.f32.gmra.mxu0 %v246
    %v589 = vpop.f32.mrf.mxu0
    %v590 = vadd.f32 %v506, %v589
    %v591 = vpop.f32.mrf.mxu0
    %592 = vmatprep.mubr.f32.mxu0 0.0
    %593 = vmatmul.mubr.f32.gmra.mxu0 %v249
    %v594 = vpop.f32.mrf.mxu0
    %v595 = vadd.f32 %v506, %v594
    %v596 = vpop.f32.mrf.mxu0
    %597 = vmatprep.mubr.f32.mxu0 0.0
    %598 = vmatmul.mubr.f32.gmra.mxu0 %v252
    %v599 = vpop.f32.mrf.mxu0
    %v600 = vadd.f32 %v506, %v599
    %v601 = vpop.f32.mrf.mxu0
    %602 = vmatprep.mubr.f32.mxu0 0.0
    %603 = vmatmul.mubr.f32.gmra.mxu0 %v255
    %v604 = vpop.f32.mrf.mxu0
    %v605 = vadd.f32 %v506, %v604
    %v606 = vpop.f32.mrf.mxu0
    %607 = vmatprep.mubr.f32.mxu0 0.0
    %608 = vmatmul.mubr.f32.gmra.mxu0 %v258
    %v609 = vpop.f32.mrf.mxu0
    %v610 = vadd.f32 %v506, %v609
    %v611 = vpop.f32.mrf.mxu0
    %612 = vdwg.mxu0
    %613 = vst.msk [vmem:[#allocation4] sm:$0xff] %vm235, %v575
    %614 = vst.msk [vmem:[#allocation4 + $0x8] sm:$0xff] %vm235, %v580
    %615 = vst.msk [vmem:[#allocation4 + $0x10] sm:$0xff] %vm235, %v585
    %616 = vst.msk [vmem:[#allocation4 + $0x18] sm:$0xff] %vm235, %v590
    %617 = vst.msk [vmem:[#allocation4 + $0x20] sm:$0xff] %vm235, %v595
    %618 = vst.msk [vmem:[#allocation4 + $0x28] sm:$0xff] %vm235, %v600
    %619 = vst.msk [vmem:[#allocation4 + $0x30] sm:$0xff] %vm235, %v605
    %620 = vst.msk [vmem:[#allocation4 + $0x38] sm:$0xff] %vm235, %v610
    %621 = vst.msk [vmem:[#allocation5] sm:$0xff] %vm235, 0.0
    %622 = vst.msk [vmem:[#allocation5 + $0x8] sm:$0xff] %vm235, 0.0
    %623 = vst.msk [vmem:[#allocation5 + $0x10] sm:$0xff] %vm235, 0.0
    %624 = vst.msk [vmem:[#allocation5 + $0x18] sm:$0xff] %vm235, 0.0
    %625 = vst.msk [vmem:[#allocation5 + $0x20] sm:$0xff] %vm235, 0.0
    %626 = vst.msk [vmem:[#allocation5 + $0x28] sm:$0xff] %vm235, 0.0
    %627 = vst.msk [vmem:[#allocation5 + $0x30] sm:$0xff] %vm235, 0.0
    %628 = vst.msk [vmem:[#allocation5 + $0x38] sm:$0xff] %vm235, 0.0
    %v629 = vld [vmem:[#allocation15] sm:$0xff]
    %v630 = vld [vmem:[#allocation15 + $0x8] sm:$0xff]
    %v631 = vld [vmem:[#allocation15 + $0x10] sm:$0xff]
    %v632 = vld [vmem:[#allocation15 + $0x18] sm:$0xff]
    %v633 = vld [vmem:[#allocation17] sm:$0xff]
    %v634 = vld [vmem:[#allocation17 + $0x8] sm:$0xff]
    %v635 = vld [vmem:[#allocation17 + $0x10] sm:$0xff]
    %v636 = vld [vmem:[#allocation17 + $0x18] sm:$0xff]
    %v637 = vld [vmem:[#allocation18] sm:$0xff]
    %v638 = vld [vmem:[#allocation18 + $0x8] sm:$0xff]
    %v639 = vld [vmem:[#allocation18 + $0x10] sm:$0xff]
    %v640 = vld [vmem:[#allocation18 + $0x18] sm:$0xff]
    %v641 = vld [vmem:[%s13] sm:$0x1]
    %s642 = sld [smem:[#allocation7]]
    // While loop
    $region130: #{tpu_custom_call.1} parent=1 // loop_pre_header
      _
    $region131: #{tpu_custom_call.1} parent=1 // loop_header
      %s644 = sphi 0, %s646
      %p645 = scmp.ge.s32.totalorder %s644, %s642
      %v649 = vphi 0.0, %v896
    $region132: #{tpu_custom_call.1} parent=1 // loop_header_branch
      %648 = sbr.rel (%p645) target = $region136
    $region133: #{tpu_custom_call.1} parent=1 // loop_body
      %v651 = vsel %vm235, %v649, 0
      %653 = vmatprep.subr.mxu0 0.0
      %654 = vmatpush1.msra.mxu0 0.0
      %655 = vmatprep.subr.mxu0 0.0
      %656 = vmatpush1.msra.mxu0 0.0
      %657 = vmatprep.subr.mxu0 0.0
      %658 = vmatpush1.msra.mxu0 0.0
      %659 = vmatprep.subr.mxu0 0.0
      %660 = vmatpush1.msra.mxu0 0.0
      %661 = vmatprep.subr.mxu0 0.0
      %662 = vmatpush1.msra.mxu0 0.0
      %663 = vmatprep.subr.mxu0 0.0
      %664 = vmatpush1.msra.mxu0 0.0
      %665 = vmatprep.subr.mxu0 0.0
      %666 = vmatpush1.msra.mxu0 0.0
      %667 = vmatprep.subr.mxu0 0.0
      %668 = vmatpush1.msra.mxu0 0.0
      %669 = vmatprep.subr.mxu0 0.0
      %670 = vmatpush1.msra.mxu0 0.0
      %671 = vmatprep.subr.mxu0 0.0
      %672 = vmatpush1.msra.mxu0 0.0
      %673 = vmatprep.subr.mxu0 0.0
      %674 = vmatpush1.msra.mxu0 0.0
      %675 = vmatprep.subr.mxu0 0.0
      %676 = vmatpush1.msra.mxu0 0.0
      %677 = vmatprep.subr.mxu0 0.0
      %678 = vmatpush1.msra.mxu0 %v632
      %679 = vmatprep.subr.mxu0 0.0
      %680 = vmatpush1.msra.mxu0 %v631
      %681 = vmatprep.subr.mxu0 0.0
      %682 = vmatpush1.msra.mxu0 %v630
      %683 = vmatprep.subr.mxu0 0.0
      %684 = vmatpush1.msra.mxu0 %v629
      %685 = vmatprep.subr.mxu0 0.0
      %686 = vmatpush2.msra.mxu0 0.0
      %687 = vmatprep.subr.mxu0 0.0
      %688 = vmatpush2.msra.mxu0 0.0
      %689 = vmatprep.subr.mxu0 0.0
      %690 = vmatpush2.msra.mxu0 0.0
      %691 = vmatprep.subr.mxu0 0.0
      %692 = vmatpush2.msra.mxu0 0.0
      %693 = vmatprep.subr.mxu0 0.0
      %694 = vmatpush2.msra.mxu0 0.0
      %695 = vmatprep.subr.mxu0 0.0
      %696 = vmatpush2.msra.mxu0 0.0
      %697 = vmatprep.subr.mxu0 0.0
      %698 = vmatpush2.msra.mxu0 0.0
      %699 = vmatprep.subr.mxu0 0.0
      %700 = vmatpush2.msra.mxu0 0.0
      %701 = vmatprep.subr.mxu0 0.0
      %702 = vmatpush2.msra.mxu0 0.0
      %703 = vmatprep.subr.mxu0 0.0
      %704 = vmatpush2.msra.mxu0 0.0
      %705 = vmatprep.subr.mxu0 0.0
      %706 = vmatpush2.msra.mxu0 0.0
      %707 = vmatprep.subr.mxu0 0.0
      %708 = vmatpush2.msra.mxu0 0.0
      %709 = vmatprep.subr.mxu0 0.0
      %710 = vmatpush2.msra.mxu0 0.0
      %711 = vmatprep.subr.mxu0 0.0
      %712 = vmatpush2.msra.mxu0 0.0
      %713 = vmatprep.subr.mxu0 0.0
      %714 = vmatpush2.msra.mxu0 0.0
      %715 = vmatprep.subr.mxu0 0.0
      %716 = vmatpush2.msra.mxu0 0.0
      %717 = vmatprep.mubr.f32.mxu0 0.0
      %718 = vmatmul.mubr.f32.gmra.mxu0 %v651
      %v719 = vpop.f32.mrf.mxu0
      %v720 = vadd.f32 0.0, %v719
      %v721 = vpop.f32.mrf.mxu0
      %722 = vdwg.mxu0
      %723 = vmatprep.subr.mxu0 0.0
      %724 = vmatpush1.msra.mxu0 0.0
      %725 = vmatprep.subr.mxu0 0.0
      %726 = vmatpush1.msra.mxu0 0.0
      %727 = vmatprep.subr.mxu0 0.0
      %728 = vmatpush1.msra.mxu0 0.0
      %729 = vmatprep.subr.mxu0 0.0
      %730 = vmatpush1.msra.mxu0 0.0
      %731 = vmatprep.subr.mxu0 0.0
      %732 = vmatpush1.msra.mxu0 0.0
      %733 = vmatprep.subr.mxu0 0.0
      %734 = vmatpush1.msra.mxu0 0.0
      %735 = vmatprep.subr.mxu0 0.0
      %736 = vmatpush1.msra.mxu0 0.0
      %737 = vmatprep.subr.mxu0 0.0
      %738 = vmatpush1.msra.mxu0 0.0
      %739 = vmatprep.subr.mxu0 0.0
      %740 = vmatpush1.msra.mxu0 0.0
      %741 = vmatprep.subr.mxu0 0.0
      %742 = vmatpush1.msra.mxu0 0.0
      %743 = vmatprep.subr.mxu0 0.0
      %744 = vmatpush1.msra.mxu0 0.0
      %745 = vmatprep.subr.mxu0 0.0
      %746 = vmatpush1.msra.mxu0 0.0
      %747 = vmatprep.subr.mxu0 0.0
      %748 = vmatpush1.msra.mxu0 %v636
      %749 = vmatprep.subr.mxu0 0.0
      %750 = vmatpush1.msra.mxu0 %v635
      %751 = vmatprep.subr.mxu0 0.0
      %752 = vmatpush1.msra.mxu0 %v634
      %753 = vmatprep.subr.mxu0 0.0
      %754 = vmatpush1.msra.mxu0 %v633
      %755 = vmatprep.subr.mxu0 0.0
      %756 = vmatpush2.msra.mxu0 0.0
      %757 = vmatprep.subr.mxu0 0.0
      %758 = vmatpush2.msra.mxu0 0.0
      %759 = vmatprep.subr.mxu0 0.0
      %760 = vmatpush2.msra.mxu0 0.0
      %761 = vmatprep.subr.mxu0 0.0
      %762 = vmatpush2.msra.mxu0 0.0
      %763 = vmatprep.subr.mxu0 0.0
      %764 = vmatpush2.msra.mxu0 0.0
      %765 = vmatprep.subr.mxu0 0.0
      %766 = vmatpush2.msra.mxu0 0.0
      %767 = vmatprep.subr.mxu0 0.0
      %768 = vmatpush2.msra.mxu0 0.0
      %769 = vmatprep.subr.mxu0 0.0
      %770 = vmatpush2.msra.mxu0 0.0
      %771 = vmatprep.subr.mxu0 0.0
      %772 = vmatpush2.msra.mxu0 0.0
      %773 = vmatprep.subr.mxu0 0.0
      %774 = vmatpush2.msra.mxu0 0.0
      %775 = vmatprep.subr.mxu0 0.0
      %776 = vmatpush2.msra.mxu0 0.0
      %777 = vmatprep.subr.mxu0 0.0
      %778 = vmatpush2.msra.mxu0 0.0
      %779 = vmatprep.subr.mxu0 0.0
      %780 = vmatpush2.msra.mxu0 0.0
      %781 = vmatprep.subr.mxu0 0.0
      %782 = vmatpush2.msra.mxu0 0.0
      %783 = vmatprep.subr.mxu0 0.0
      %784 = vmatpush2.msra.mxu0 0.0
      %785 = vmatprep.subr.mxu0 0.0
      %786 = vmatpush2.msra.mxu0 0.0
      %787 = vmatprep.mubr.f32.mxu0 0.0
      %788 = vmatmul.mubr.f32.gmra.mxu0 %v651
      %v789 = vpop.f32.mrf.mxu0
      %v790 = vadd.f32 0.0, %v789
      %v791 = vpop.f32.mrf.mxu0
      %792 = vdwg.mxu0
      %v794 = vlaneseq
      %v795 = vshrl.u32 %v794, 7
      %v796 = vsub.s32 0, %v795
      %v797 = vrot.slane %v641, %v796
      %799 = vmatprep.subr.mxu0 0.0
      %800 = vmatpush1.msra.mxu0 0.0
      %801 = vmatprep.subr.mxu0 0.0
      %802 = vmatpush1.msra.mxu0 0.0
      %803 = vmatprep.subr.mxu0 0.0
      %804 = vmatpush1.msra.mxu0 0.0
      %805 = vmatprep.subr.mxu0 0.0
      %806 = vmatpush1.msra.mxu0 0.0
      %807 = vmatprep.subr.mxu0 0.0
      %808 = vmatpush1.msra.mxu0 0.0
      %809 = vmatprep.subr.mxu0 0.0
      %810 = vmatpush1.msra.mxu0 0.0
      %811 = vmatprep.subr.mxu0 0.0
      %812 = vmatpush1.msra.mxu0 0.0
      %813 = vmatprep.subr.mxu0 0.0
      %814 = vmatpush1.msra.mxu0 0.0
      %815 = vmatprep.subr.mxu0 0.0
      %816 = vmatpush1.msra.mxu0 0.0
      %817 = vmatprep.subr.mxu0 0.0
      %818 = vmatpush1.msra.mxu0 0.0
      %819 = vmatprep.subr.mxu0 0.0
      %820 = vmatpush1.msra.mxu0 0.0
      %821 = vmatprep.subr.mxu0 0.0
      %822 = vmatpush1.msra.mxu0 0.0
      %823 = vmatprep.subr.mxu0 0.0
      %824 = vmatpush1.msra.mxu0 %v640
      %825 = vmatprep.subr.mxu0 0.0
      %826 = vmatpush1.msra.mxu0 %v639
      %827 = vmatprep.subr.mxu0 0.0
      %828 = vmatpush1.msra.mxu0 %v638
      %829 = vmatprep.subr.mxu0 0.0
      %830 = vmatpush1.msra.mxu0 %v637
      %831 = vmatprep.subr.mxu0 0.0
      %832 = vmatpush2.msra.mxu0 0.0
      %833 = vmatprep.subr.mxu0 0.0
      %834 = vmatpush2.msra.mxu0 0.0
      %835 = vmatprep.subr.mxu0 0.0
      %836 = vmatpush2.msra.mxu0 0.0
      %837 = vmatprep.subr.mxu0 0.0
      %838 = vmatpush2.msra.mxu0 0.0
      %839 = vmatprep.subr.mxu0 0.0
      %840 = vmatpush2.msra.mxu0 0.0
      %841 = vmatprep.subr.mxu0 0.0
      %842 = vmatpush2.msra.mxu0 0.0
      %843 = vmatprep.subr.mxu0 0.0
      %844 = vmatpush2.msra.mxu0 0.0
      %845 = vmatprep.subr.mxu0 0.0
      %846 = vmatpush2.msra.mxu0 0.0
      %847 = vmatprep.subr.mxu0 0.0
      %848 = vmatpush2.msra.mxu0 0.0
      %849 = vmatprep.subr.mxu0 0.0
      %850 = vmatpush2.msra.mxu0 0.0
      %851 = vmatprep.subr.mxu0 0.0
      %852 = vmatpush2.msra.mxu0 0.0
      %853 = vmatprep.subr.mxu0 0.0
      %854 = vmatpush2.msra.mxu0 0.0
      %855 = vmatprep.subr.mxu0 0.0
      %856 = vmatpush2.msra.mxu0 0.0
      %857 = vmatprep.subr.mxu0 0.0
      %858 = vmatpush2.msra.mxu0 0.0
      %859 = vmatprep.subr.mxu0 0.0
      %860 = vmatpush2.msra.mxu0 0.0
      %861 = vmatprep.subr.mxu0 0.0
      %862 = vmatpush2.msra.mxu0 0.0
      %863 = vmatprep.mubr.f32.mxu0 0.0
      %864 = vmatmul.mubr.f32.gmra.mxu0 %v651
      %v865 = vpop.f32.mrf.mxu0
      %v866 = vadd.f32 %v797, %v865
      %v867 = vpop.f32.mrf.mxu0
      %868 = vdwg.mxu0
      %s869 = smul.u32 %s644, 8
      %s870 = scalar_lea.vmem [#allocation2], %s869
      %v871 = vld [vmem:[%s870] sm:$0xff]
      %v872 = vadd.f32 %v871, %v720
      %v873 = vxor.u32 %v872, 2147483648
      %v874 = vmul.f32 %v873, 1.442695
      %v875 = vpow.pop %v874
      %v876 = vadd.f32 %v875, 1.0
      %v877 = vrcp.pop %v876
      %v878 = vmul.f32 1.0, %v877
      %s879 = scalar_lea.vmem [#allocation3], %s869
      %v880 = vld [vmem:[%s879] sm:$0xff]
      %v881 = vadd.f32 %v880, %v790
      %v882 = vxor.u32 %v881, 2147483648
      %v883 = vmul.f32 %v882, 1.442695
      %v884 = vpow.pop %v883
      %v885 = vadd.f32 %v884, 1.0
      %v886 = vrcp.pop %v885
      %v887 = vmul.f32 1.0, %v886
      %s888 = scalar_lea.vmem [#allocation4], %s869
      %v889 = vld [vmem:[%s888] sm:$0xff]
      %v890 = vmul.f32 %v878, %v866
      %v891 = vadd.f32 %v889, %v890
      %v892 = vtanh.pop %v891
      %v893 = vsub.f32 1.0, %v887
      %v894 = vmul.f32 %v893, %v892
      %v895 = vmul.f32 %v887, %v649
      %v896 = vadd.f32 %v894, %v895
      %s897 = scalar_lea.vmem [#allocation5], %s869
      %898 = vst.msk [vmem:[%s897] sm:$0xff] %vm235, %v896
    $region134: #{tpu_custom_call.1} parent=1 // loop_footer
      %s646 = sadd.s32 %s644, 1
    $region135: #{tpu_custom_call.1} parent=1 // loop_footer_branch
      %643 = sbr.rel target = $region131
    $region136: #{tpu_custom_call.1} parent=1 // loop_exit
      _
    %v899 = vld [vmem:[#allocation9] sm:$0xff]
    %v900 = vld [vmem:[#allocation5] sm:$0xff]
    %v901 = vld [vmem:[#allocation5 + $0x8] sm:$0xff]
    %v902 = vld [vmem:[#allocation5 + $0x10] sm:$0xff]
    %v903 = vld [vmem:[#allocation5 + $0x18] sm:$0xff]
    %v904 = vld [vmem:[#allocation5 + $0x20] sm:$0xff]
    %v905 = vld [vmem:[#allocation5 + $0x28] sm:$0xff]
    %v906 = vld [vmem:[#allocation5 + $0x30] sm:$0xff]
    %v907 = vld [vmem:[#allocation5 + $0x38] sm:$0xff]
    %v908 = vmul.f32 %v899, %v900
    %v909 = vmul.f32 %v899, %v901
    %v910 = vmul.f32 %v899, %v902
    %v911 = vmul.f32 %v899, %v903
    %v912 = vmul.f32 %v899, %v904
    %v913 = vmul.f32 %v899, %v905
    %v914 = vmul.f32 %v899, %v906
    %v915 = vmul.f32 %v899, %v907
    %v916 = vld [vmem:[#allocation23] sm:$0xff]
    %v917 = vld [vmem:[#allocation23 + $0x8] sm:$0xff]
    %v918 = vld [vmem:[#allocation23 + $0x10] sm:$0xff]
    %v919 = vld [vmem:[#allocation23 + $0x18] sm:$0xff]
    %v920 = vld [vmem:[%s17] sm:$0x1]
    %v922 = vlaneseq
    %v923 = vshrl.u32 %v922, 7
    %v924 = vsub.s32 0, %v923
    %v925 = vrot.slane %v920, %v924
    %v928 = vsel %vm235, %v899, 0
    %930 = vmatprep.subr.mxu0 0.0
    %931 = vmatpush1.msra.mxu0 0.0
    %932 = vmatprep.subr.mxu0 0.0
    %933 = vmatpush1.msra.mxu0 0.0
    %934 = vmatprep.subr.mxu0 0.0
    %935 = vmatpush1.msra.mxu0 0.0
    %936 = vmatprep.subr.mxu0 0.0
    %937 = vmatpush1.msra.mxu0 0.0
    %938 = vmatprep.subr.mxu0 0.0
    %939 = vmatpush1.msra.mxu0 0.0
    %940 = vmatprep.subr.mxu0 0.0
    %941 = vmatpush1.msra.mxu0 0.0
    %942 = vmatprep.subr.mxu0 0.0
    %943 = vmatpush1.msra.mxu0 0.0
    %944 = vmatprep.subr.mxu0 0.0
    %945 = vmatpush1.msra.mxu0 0.0
    %946 = vmatprep.subr.mxu0 0.0
    %947 = vmatpush1.msra.mxu0 0.0
    %948 = vmatprep.subr.mxu0 0.0
    %949 = vmatpush1.msra.mxu0 0.0
    %950 = vmatprep.subr.mxu0 0.0
    %951 = vmatpush1.msra.mxu0 0.0
    %952 = vmatprep.subr.mxu0 0.0
    %953 = vmatpush1.msra.mxu0 0.0
    %954 = vmatprep.subr.mxu0 0.0
    %955 = vmatpush1.msra.mxu0 %v919
    %956 = vmatprep.subr.mxu0 0.0
    %957 = vmatpush1.msra.mxu0 %v918
    %958 = vmatprep.subr.mxu0 0.0
    %959 = vmatpush1.msra.mxu0 %v917
    %960 = vmatprep.subr.mxu0 0.0
    %961 = vmatpush1.msra.mxu0 %v916
    %962 = vmatprep.subr.mxu0 0.0
    %963 = vmatpush2.msra.mxu0 0.0
    %964 = vmatprep.subr.mxu0 0.0
    %965 = vmatpush2.msra.mxu0 0.0
    %966 = vmatprep.subr.mxu0 0.0
    %967 = vmatpush2.msra.mxu0 0.0
    %968 = vmatprep.subr.mxu0 0.0
    %969 = vmatpush2.msra.mxu0 0.0
    %970 = vmatprep.subr.mxu0 0.0
    %971 = vmatpush2.msra.mxu0 0.0
    %972 = vmatprep.subr.mxu0 0.0
    %973 = vmatpush2.msra.mxu0 0.0
    %974 = vmatprep.subr.mxu0 0.0
    %975 = vmatpush2.msra.mxu0 0.0
    %976 = vmatprep.subr.mxu0 0.0
    %977 = vmatpush2.msra.mxu0 0.0
    %978 = vmatprep.subr.mxu0 0.0
    %979 = vmatpush2.msra.mxu0 0.0
    %980 = vmatprep.subr.mxu0 0.0
    %981 = vmatpush2.msra.mxu0 0.0
    %982 = vmatprep.subr.mxu0 0.0
    %983 = vmatpush2.msra.mxu0 0.0
    %984 = vmatprep.subr.mxu0 0.0
    %985 = vmatpush2.msra.mxu0 0.0
    %986 = vmatprep.subr.mxu0 0.0
    %987 = vmatpush2.msra.mxu0 0.0
    %988 = vmatprep.subr.mxu0 0.0
    %989 = vmatpush2.msra.mxu0 0.0
    %990 = vmatprep.subr.mxu0 0.0
    %991 = vmatpush2.msra.mxu0 0.0
    %992 = vmatprep.subr.mxu0 0.0
    %993 = vmatpush2.msra.mxu0 0.0
    %994 = vmatprep.mubr.f32.mxu0 0.0
    %995 = vmatmul.mubr.f32.gmra.mxu0 %v928
    %v996 = vpop.f32.mrf.mxu0
    %v997 = vadd.f32 %v925, %v996
    %v998 = vpop.f32.mrf.mxu0
    %999 = vdwg.mxu0
    %v1000 = vld [vmem:[#allocation24] sm:$0xff]
    %v1001 = vld [vmem:[#allocation24 + $0x8] sm:$0xff]
    %v1002 = vld [vmem:[#allocation24 + $0x10] sm:$0xff]
    %v1003 = vld [vmem:[#allocation24 + $0x18] sm:$0xff]
    %v1005 = vsel %vm235, %v900, 0
    %v1008 = vsel %vm235, %v901, 0
    %v1011 = vsel %vm235, %v902, 0
    %v1014 = vsel %vm235, %v903, 0
    %v1017 = vsel %vm235, %v904, 0
    %v1020 = vsel %vm235, %v905, 0
    %v1023 = vsel %vm235, %v906, 0
    %v1026 = vsel %vm235, %v907, 0
    %1028 = vmatprep.subr.mxu0 0.0
    %1029 = vmatpush1.msra.mxu0 0.0
    %1030 = vmatprep.subr.mxu0 0.0
    %1031 = vmatpush1.msra.mxu0 0.0
    %1032 = vmatprep.subr.mxu0 0.0
    %1033 = vmatpush1.msra.mxu0 0.0
    %1034 = vmatprep.subr.mxu0 0.0
    %1035 = vmatpush1.msra.mxu0 0.0
    %1036 = vmatprep.subr.mxu0 0.0
    %1037 = vmatpush1.msra.mxu0 0.0
    %1038 = vmatprep.subr.mxu0 0.0
    %1039 = vmatpush1.msra.mxu0 0.0
    %1040 = vmatprep.subr.mxu0 0.0
    %1041 = vmatpush1.msra.mxu0 0.0
    %1042 = vmatprep.subr.mxu0 0.0
    %1043 = vmatpush1.msra.mxu0 0.0
    %1044 = vmatprep.subr.mxu0 0.0
    %1045 = vmatpush1.msra.mxu0 0.0
    %1046 = vmatprep.subr.mxu0 0.0
    %1047 = vmatpush1.msra.mxu0 0.0
    %1048 = vmatprep.subr.mxu0 0.0
    %1049 = vmatpush1.msra.mxu0 0.0
    %1050 = vmatprep.subr.mxu0 0.0
    %1051 = vmatpush1.msra.mxu0 0.0
    %1052 = vmatprep.subr.mxu0 0.0
    %1053 = vmatpush1.msra.mxu0 %v1003
    %1054 = vmatprep.subr.mxu0 0.0
    %1055 = vmatpush1.msra.mxu0 %v1002
    %1056 = vmatprep.subr.mxu0 0.0
    %1057 = vmatpush1.msra.mxu0 %v1001
    %1058 = vmatprep.subr.mxu0 0.0
    %1059 = vmatpush1.msra.mxu0 %v1000
    %1060 = vmatprep.subr.mxu0 0.0
    %1061 = vmatpush2.msra.mxu0 0.0
    %1062 = vmatprep.subr.mxu0 0.0
    %1063 = vmatpush2.msra.mxu0 0.0
    %1064 = vmatprep.subr.mxu0 0.0
    %1065 = vmatpush2.msra.mxu0 0.0
    %1066 = vmatprep.subr.mxu0 0.0
    %1067 = vmatpush2.msra.mxu0 0.0
    %1068 = vmatprep.subr.mxu0 0.0
    %1069 = vmatpush2.msra.mxu0 0.0
    %1070 = vmatprep.subr.mxu0 0.0
    %1071 = vmatpush2.msra.mxu0 0.0
    %1072 = vmatprep.subr.mxu0 0.0
    %1073 = vmatpush2.msra.mxu0 0.0
    %1074 = vmatprep.subr.mxu0 0.0
    %1075 = vmatpush2.msra.mxu0 0.0
    %1076 = vmatprep.subr.mxu0 0.0
    %1077 = vmatpush2.msra.mxu0 0.0
    %1078 = vmatprep.subr.mxu0 0.0
    %1079 = vmatpush2.msra.mxu0 0.0
    %1080 = vmatprep.subr.mxu0 0.0
    %1081 = vmatpush2.msra.mxu0 0.0
    %1082 = vmatprep.subr.mxu0 0.0
    %1083 = vmatpush2.msra.mxu0 0.0
    %1084 = vmatprep.subr.mxu0 0.0
    %1085 = vmatpush2.msra.mxu0 0.0
    %1086 = vmatprep.subr.mxu0 0.0
    %1087 = vmatpush2.msra.mxu0 0.0
    %1088 = vmatprep.subr.mxu0 0.0
    %1089 = vmatpush2.msra.mxu0 0.0
    %1090 = vmatprep.subr.mxu0 0.0
    %1091 = vmatpush2.msra.mxu0 0.0
    %1092 = vmatprep.mubr.f32.mxu0 0.0
    %1093 = vmatmul.mubr.f32.gmra.mxu0 %v1005
    %v1094 = vpop.f32.mrf.mxu0
    %v1095 = vadd.f32 0.0, %v1094
    %v1096 = vpop.f32.mrf.mxu0
    %1097 = vmatprep.mubr.f32.mxu0 0.0
    %1098 = vmatmul.mubr.f32.gmra.mxu0 %v1008
    %v1099 = vpop.f32.mrf.mxu0
    %v1100 = vadd.f32 0.0, %v1099
    %v1101 = vpop.f32.mrf.mxu0
    %1102 = vmatprep.mubr.f32.mxu0 0.0
    %1103 = vmatmul.mubr.f32.gmra.mxu0 %v1011
    %v1104 = vpop.f32.mrf.mxu0
    %v1105 = vadd.f32 0.0, %v1104
    %v1106 = vpop.f32.mrf.mxu0
    %1107 = vmatprep.mubr.f32.mxu0 0.0
    %1108 = vmatmul.mubr.f32.gmra.mxu0 %v1014
    %v1109 = vpop.f32.mrf.mxu0
    %v1110 = vadd.f32 0.0, %v1109
    %v1111 = vpop.f32.mrf.mxu0
    %1112 = vmatprep.mubr.f32.mxu0 0.0
    %1113 = vmatmul.mubr.f32.gmra.mxu0 %v1017
    %v1114 = vpop.f32.mrf.mxu0
    %v1115 = vadd.f32 0.0, %v1114
    %v1116 = vpop.f32.mrf.mxu0
    %1117 = vmatprep.mubr.f32.mxu0 0.0
    %1118 = vmatmul.mubr.f32.gmra.mxu0 %v1020
    %v1119 = vpop.f32.mrf.mxu0
    %v1120 = vadd.f32 0.0, %v1119
    %v1121 = vpop.f32.mrf.mxu0
    %1122 = vmatprep.mubr.f32.mxu0 0.0
    %1123 = vmatmul.mubr.f32.gmra.mxu0 %v1023
    %v1124 = vpop.f32.mrf.mxu0
    %v1125 = vadd.f32 0.0, %v1124
    %v1126 = vpop.f32.mrf.mxu0
    %1127 = vmatprep.mubr.f32.mxu0 0.0
    %1128 = vmatmul.mubr.f32.gmra.mxu0 %v1026
    %v1129 = vpop.f32.mrf.mxu0
    %v1130 = vadd.f32 0.0, %v1129
    %v1131 = vpop.f32.mrf.mxu0
    %1132 = vdwg.mxu0
    %v1133 = vadd.f32 %v997, %v1095
    %v1134 = vadd.f32 %v997, %v1100
    %v1135 = vadd.f32 %v997, %v1105
    %v1136 = vadd.f32 %v997, %v1110
    %v1137 = vadd.f32 %v997, %v1115
    %v1138 = vadd.f32 %v997, %v1120
    %v1139 = vadd.f32 %v997, %v1125
    %v1140 = vadd.f32 %v997, %v1130
    %v1141 = vld [vmem:[#allocation26] sm:$0xff]
    %v1142 = vld [vmem:[#allocation26 + $0x8] sm:$0xff]
    %v1143 = vld [vmem:[#allocation26 + $0x10] sm:$0xff]
    %v1144 = vld [vmem:[#allocation26 + $0x18] sm:$0xff]
    %v1146 = vsel %vm235, %v908, 0
    %v1149 = vsel %vm235, %v909, 0
    %v1152 = vsel %vm235, %v910, 0
    %v1155 = vsel %vm235, %v911, 0
    %v1158 = vsel %vm235, %v912, 0
    %v1161 = vsel %vm235, %v913, 0
    %v1164 = vsel %vm235, %v914, 0
    %v1167 = vsel %vm235, %v915, 0
    %1169 = vmatprep.subr.mxu0 0.0
    %1170 = vmatpush1.msra.mxu0 0.0
    %1171 = vmatprep.subr.mxu0 0.0
    %1172 = vmatpush1.msra.mxu0 0.0
    %1173 = vmatprep.subr.mxu0 0.0
    %1174 = vmatpush1.msra.mxu0 0.0
    %1175 = vmatprep.subr.mxu0 0.0
    %1176 = vmatpush1.msra.mxu0 0.0
    %1177 = vmatprep.subr.mxu0 0.0
    %1178 = vmatpush1.msra.mxu0 0.0
    %1179 = vmatprep.subr.mxu0 0.0
    %1180 = vmatpush1.msra.mxu0 0.0
    %1181 = vmatprep.subr.mxu0 0.0
    %1182 = vmatpush1.msra.mxu0 0.0
    %1183 = vmatprep.subr.mxu0 0.0
    %1184 = vmatpush1.msra.mxu0 0.0
    %1185 = vmatprep.subr.mxu0 0.0
    %1186 = vmatpush1.msra.mxu0 0.0
    %1187 = vmatprep.subr.mxu0 0.0
    %1188 = vmatpush1.msra.mxu0 0.0
    %1189 = vmatprep.subr.mxu0 0.0
    %1190 = vmatpush1.msra.mxu0 0.0
    %1191 = vmatprep.subr.mxu0 0.0
    %1192 = vmatpush1.msra.mxu0 0.0
    %1193 = vmatprep.subr.mxu0 0.0
    %1194 = vmatpush1.msra.mxu0 %v1144
    %1195 = vmatprep.subr.mxu0 0.0
    %1196 = vmatpush1.msra.mxu0 %v1143
    %1197 = vmatprep.subr.mxu0 0.0
    %1198 = vmatpush1.msra.mxu0 %v1142
    %1199 = vmatprep.subr.mxu0 0.0
    %1200 = vmatpush1.msra.mxu0 %v1141
    %1201 = vmatprep.subr.mxu0 0.0
    %1202 = vmatpush2.msra.mxu0 0.0
    %1203 = vmatprep.subr.mxu0 0.0
    %1204 = vmatpush2.msra.mxu0 0.0
    %1205 = vmatprep.subr.mxu0 0.0
    %1206 = vmatpush2.msra.mxu0 0.0
    %1207 = vmatprep.subr.mxu0 0.0
    %1208 = vmatpush2.msra.mxu0 0.0
    %1209 = vmatprep.subr.mxu0 0.0
    %1210 = vmatpush2.msra.mxu0 0.0
    %1211 = vmatprep.subr.mxu0 0.0
    %1212 = vmatpush2.msra.mxu0 0.0
    %1213 = vmatprep.subr.mxu0 0.0
    %1214 = vmatpush2.msra.mxu0 0.0
    %1215 = vmatprep.subr.mxu0 0.0
    %1216 = vmatpush2.msra.mxu0 0.0
    %1217 = vmatprep.subr.mxu0 0.0
    %1218 = vmatpush2.msra.mxu0 0.0
    %1219 = vmatprep.subr.mxu0 0.0
    %1220 = vmatpush2.msra.mxu0 0.0
    %1221 = vmatprep.subr.mxu0 0.0
    %1222 = vmatpush2.msra.mxu0 0.0
    %1223 = vmatprep.subr.mxu0 0.0
    %1224 = vmatpush2.msra.mxu0 0.0
    %1225 = vmatprep.subr.mxu0 0.0
    %1226 = vmatpush2.msra.mxu0 0.0
    %1227 = vmatprep.subr.mxu0 0.0
    %1228 = vmatpush2.msra.mxu0 0.0
    %1229 = vmatprep.subr.mxu0 0.0
    %1230 = vmatpush2.msra.mxu0 0.0
    %1231 = vmatprep.subr.mxu0 0.0
    %1232 = vmatpush2.msra.mxu0 0.0
    %1233 = vmatprep.mubr.f32.mxu0 0.0
    %1234 = vmatmul.mubr.f32.gmra.mxu0 %v1146
    %v1235 = vpop.f32.mrf.mxu0
    %v1236 = vadd.f32 0.0, %v1235
    %v1237 = vpop.f32.mrf.mxu0
    %1238 = vmatprep.mubr.f32.mxu0 0.0
    %1239 = vmatmul.mubr.f32.gmra.mxu0 %v1149
    %v1240 = vpop.f32.mrf.mxu0
    %v1241 = vadd.f32 0.0, %v1240
    %v1242 = vpop.f32.mrf.mxu0
    %1243 = vmatprep.mubr.f32.mxu0 0.0
    %1244 = vmatmul.mubr.f32.gmra.mxu0 %v1152
    %v1245 = vpop.f32.mrf.mxu0
    %v1246 = vadd.f32 0.0, %v1245
    %v1247 = vpop.f32.mrf.mxu0
    %1248 = vmatprep.mubr.f32.mxu0 0.0
    %1249 = vmatmul.mubr.f32.gmra.mxu0 %v1155
    %v1250 = vpop.f32.mrf.mxu0
    %v1251 = vadd.f32 0.0, %v1250
    %v1252 = vpop.f32.mrf.mxu0
    %1253 = vmatprep.mubr.f32.mxu0 0.0
    %1254 = vmatmul.mubr.f32.gmra.mxu0 %v1158
    %v1255 = vpop.f32.mrf.mxu0
    %v1256 = vadd.f32 0.0, %v1255
    %v1257 = vpop.f32.mrf.mxu0
    %1258 = vmatprep.mubr.f32.mxu0 0.0
    %1259 = vmatmul.mubr.f32.gmra.mxu0 %v1161
    %v1260 = vpop.f32.mrf.mxu0
    %v1261 = vadd.f32 0.0, %v1260
    %v1262 = vpop.f32.mrf.mxu0
    %1263 = vmatprep.mubr.f32.mxu0 0.0
    %1264 = vmatmul.mubr.f32.gmra.mxu0 %v1164
    %v1265 = vpop.f32.mrf.mxu0
    %v1266 = vadd.f32 0.0, %v1265
    %v1267 = vpop.f32.mrf.mxu0
    %1268 = vmatprep.mubr.f32.mxu0 0.0
    %1269 = vmatmul.mubr.f32.gmra.mxu0 %v1167
    %v1270 = vpop.f32.mrf.mxu0
    %v1271 = vadd.f32 0.0, %v1270
    %v1272 = vpop.f32.mrf.mxu0
    %1273 = vdwg.mxu0
    %v1274 = vadd.f32 %v1133, %v1236
    %v1275 = vadd.f32 %v1134, %v1241
    %v1276 = vadd.f32 %v1135, %v1246
    %v1277 = vadd.f32 %v1136, %v1251
    %v1278 = vadd.f32 %v1137, %v1256
    %v1279 = vadd.f32 %v1138, %v1261
    %v1280 = vadd.f32 %v1139, %v1266
    %v1281 = vadd.f32 %v1140, %v1271
    %v1282 = vxor.u32 %v1274, 2147483648
    %v1283 = vxor.u32 %v1275, 2147483648
    %v1284 = vxor.u32 %v1276, 2147483648
    %v1285 = vxor.u32 %v1277, 2147483648
    %v1286 = vxor.u32 %v1278, 2147483648
    %v1287 = vxor.u32 %v1279, 2147483648
    %v1288 = vxor.u32 %v1280, 2147483648
    %v1289 = vxor.u32 %v1281, 2147483648
    %v1290 = vmul.f32 %v1282, 1.442695
    %v1291 = vpow.pop %v1290
    %v1292 = vmul.f32 %v1283, 1.442695
    %v1293 = vpow.pop %v1292
    %v1294 = vmul.f32 %v1284, 1.442695
    %v1295 = vpow.pop %v1294
    %v1296 = vmul.f32 %v1285, 1.442695
    %v1297 = vpow.pop %v1296
    %v1298 = vmul.f32 %v1286, 1.442695
    %v1299 = vpow.pop %v1298
    %v1300 = vmul.f32 %v1287, 1.442695
    %v1301 = vpow.pop %v1300
    %v1302 = vmul.f32 %v1288, 1.442695
    %v1303 = vpow.pop %v1302
    %v1304 = vmul.f32 %v1289, 1.442695
    %v1305 = vpow.pop %v1304
    %v1306 = vadd.f32 %v1291, 1.0
    %v1307 = vadd.f32 %v1293, 1.0
    %v1308 = vadd.f32 %v1295, 1.0
    %v1309 = vadd.f32 %v1297, 1.0
    %v1310 = vadd.f32 %v1299, 1.0
    %v1311 = vadd.f32 %v1301, 1.0
    %v1312 = vadd.f32 %v1303, 1.0
    %v1313 = vadd.f32 %v1305, 1.0
    %v1314 = vrcp.pop %v1306
    %v1315 = vmul.f32 1.0, %v1314
    %v1316 = vrcp.pop %v1307
    %v1317 = vmul.f32 1.0, %v1316
    %v1318 = vrcp.pop %v1308
    %v1319 = vmul.f32 1.0, %v1318
    %v1320 = vrcp.pop %v1309
    %v1321 = vmul.f32 1.0, %v1320
    %v1322 = vrcp.pop %v1310
    %v1323 = vmul.f32 1.0, %v1322
    %v1324 = vrcp.pop %v1311
    %v1325 = vmul.f32 1.0, %v1324
    %v1326 = vrcp.pop %v1312
    %v1327 = vmul.f32 1.0, %v1326
    %v1328 = vrcp.pop %v1313
    %v1329 = vmul.f32 1.0, %v1328
    %v1330 = vld [vmem:[%s18] sm:$0xff]
    %v1331 = vld [vmem:[%s18 + $0x8] sm:$0xff]
    %v1332 = vld [vmem:[%s18 + $0x10] sm:$0xff]
    %v1333 = vld [vmem:[%s18 + $0x18] sm:$0xff]
    %v1334 = vld [vmem:[%s18 + $0x20] sm:$0xff]
    %v1335 = vld [vmem:[%s18 + $0x28] sm:$0xff]
    %v1336 = vld [vmem:[%s18 + $0x30] sm:$0xff]
    %v1337 = vld [vmem:[%s18 + $0x38] sm:$0xff]
    %v1338 = vld [vmem:[%s19] sm:$0x1]
    %v1340 = vlaneseq
    %v1341 = vshrl.u32 %v1340, 7
    %v1342 = vsub.s32 0, %v1341
    %v1343 = vrot.slane %v1338, %v1342
    %vm1345 = vcmask 523264
    %v1347 = vsel %vm1345, %v1315, 0
    %v1350 = vsel %vm1345, %v1317, 0
    %v1353 = vsel %vm1345, %v1319, 0
    %v1356 = vsel %vm1345, %v1321, 0
    %v1359 = vsel %vm1345, %v1323, 0
    %v1362 = vsel %vm1345, %v1325, 0
    %v1365 = vsel %vm1345, %v1327, 0
    %v1368 = vsel %vm1345, %v1329, 0
    %1370 = vmatprep.subr.mxu0 0.0
    %1371 = vmatpush1.msra.mxu0 0.0
    %1372 = vmatprep.subr.mxu0 0.0
    %1373 = vmatpush1.msra.mxu0 0.0
    %1374 = vmatprep.subr.mxu0 0.0
    %1375 = vmatpush1.msra.mxu0 0.0
    %1376 = vmatprep.subr.mxu0 0.0
    %1377 = vmatpush1.msra.mxu0 0.0
    %1378 = vmatprep.subr.mxu0 0.0
    %1379 = vmatpush1.msra.mxu0 0.0
    %1380 = vmatprep.subr.mxu0 0.0
    %1381 = vmatpush1.msra.mxu0 0.0
    %1382 = vmatprep.subr.mxu0 0.0
    %1383 = vmatpush1.msra.mxu0 0.0
    %1384 = vmatprep.subr.mxu0 0.0
    %1385 = vmatpush1.msra.mxu0 0.0
    %1386 = vmatprep.subr.mxu0 0.0
    %1387 = vmatpush1.msra.mxu0 %v1337
    %1388 = vmatprep.subr.mxu0 0.0
    %1389 = vmatpush1.msra.mxu0 %v1336
    %1390 = vmatprep.subr.mxu0 0.0
    %1391 = vmatpush1.msra.mxu0 %v1335
    %1392 = vmatprep.subr.mxu0 0.0
    %1393 = vmatpush1.msra.mxu0 %v1334
    %1394 = vmatprep.subr.mxu0 0.0
    %1395 = vmatpush1.msra.mxu0 %v1333
    %1396 = vmatprep.subr.mxu0 0.0
    %1397 = vmatpush1.msra.mxu0 %v1332
    %1398 = vmatprep.subr.mxu0 0.0
    %1399 = vmatpush1.msra.mxu0 %v1331
    %1400 = vmatprep.subr.mxu0 0.0
    %1401 = vmatpush1.msra.mxu0 %v1330
    %1402 = vmatprep.subr.mxu0 0.0
    %1403 = vmatpush2.msra.mxu0 0.0
    %1404 = vmatprep.subr.mxu0 0.0
    %1405 = vmatpush2.msra.mxu0 0.0
    %1406 = vmatprep.subr.mxu0 0.0
    %1407 = vmatpush2.msra.mxu0 0.0
    %1408 = vmatprep.subr.mxu0 0.0
    %1409 = vmatpush2.msra.mxu0 0.0
    %1410 = vmatprep.subr.mxu0 0.0
    %1411 = vmatpush2.msra.mxu0 0.0
    %1412 = vmatprep.subr.mxu0 0.0
    %1413 = vmatpush2.msra.mxu0 0.0
    %1414 = vmatprep.subr.mxu0 0.0
    %1415 = vmatpush2.msra.mxu0 0.0
    %1416 = vmatprep.subr.mxu0 0.0
    %1417 = vmatpush2.msra.mxu0 0.0
    %1418 = vmatprep.subr.mxu0 0.0
    %1419 = vmatpush2.msra.mxu0 0.0
    %1420 = vmatprep.subr.mxu0 0.0
    %1421 = vmatpush2.msra.mxu0 0.0
    %1422 = vmatprep.subr.mxu0 0.0
    %1423 = vmatpush2.msra.mxu0 0.0
    %1424 = vmatprep.subr.mxu0 0.0
    %1425 = vmatpush2.msra.mxu0 0.0
    %1426 = vmatprep.subr.mxu0 0.0
    %1427 = vmatpush2.msra.mxu0 0.0
    %1428 = vmatprep.subr.mxu0 0.0
    %1429 = vmatpush2.msra.mxu0 0.0
    %1430 = vmatprep.subr.mxu0 0.0
    %1431 = vmatpush2.msra.mxu0 0.0
    %1432 = vmatprep.subr.mxu0 0.0
    %1433 = vmatpush2.msra.mxu0 0.0
    %1434 = vmatprep.mubr.f32.mxu0 0.0
    %1435 = vmatmul.mubr.f32.gmra.mxu0 %v1347
    %v1436 = vpop.f32.mrf.mxu0
    %v1437 = vadd.f32 %v1343, %v1436
    %v1438 = vpop.f32.mrf.mxu0
    %1439 = vmatprep.mubr.f32.mxu0 0.0
    %1440 = vmatmul.mubr.f32.gmra.mxu0 %v1350
    %v1441 = vpop.f32.mrf.mxu0
    %v1442 = vadd.f32 %v1343, %v1441
    %v1443 = vpop.f32.mrf.mxu0
    %1444 = vmatprep.mubr.f32.mxu0 0.0
    %1445 = vmatmul.mubr.f32.gmra.mxu0 %v1353
    %v1446 = vpop.f32.mrf.mxu0
    %v1447 = vadd.f32 %v1343, %v1446
    %v1448 = vpop.f32.mrf.mxu0
    %1449 = vmatprep.mubr.f32.mxu0 0.0
    %1450 = vmatmul.mubr.f32.gmra.mxu0 %v1356
    %v1451 = vpop.f32.mrf.mxu0
    %v1452 = vadd.f32 %v1343, %v1451
    %v1453 = vpop.f32.mrf.mxu0
    %1454 = vmatprep.mubr.f32.mxu0 0.0
    %1455 = vmatmul.mubr.f32.gmra.mxu0 %v1359
    %v1456 = vpop.f32.mrf.mxu0
    %v1457 = vadd.f32 %v1343, %v1456
    %v1458 = vpop.f32.mrf.mxu0
    %1459 = vmatprep.mubr.f32.mxu0 0.0
    %1460 = vmatmul.mubr.f32.gmra.mxu0 %v1362
    %v1461 = vpop.f32.mrf.mxu0
    %v1462 = vadd.f32 %v1343, %v1461
    %v1463 = vpop.f32.mrf.mxu0
    %1464 = vmatprep.mubr.f32.mxu0 0.0
    %1465 = vmatmul.mubr.f32.gmra.mxu0 %v1365
    %v1466 = vpop.f32.mrf.mxu0
    %v1467 = vadd.f32 %v1343, %v1466
    %v1468 = vpop.f32.mrf.mxu0
    %1469 = vmatprep.mubr.f32.mxu0 0.0
    %1470 = vmatmul.mubr.f32.gmra.mxu0 %v1368
    %v1471 = vpop.f32.mrf.mxu0
    %v1472 = vadd.f32 %v1343, %v1471
    %v1473 = vpop.f32.mrf.mxu0
    %1474 = vdwg.mxu0
    %v1475 = vxor.u32 %v1437, 2147483648
    %v1476 = vxor.u32 %v1442, 2147483648
    %v1477 = vxor.u32 %v1447, 2147483648
    %v1478 = vxor.u32 %v1452, 2147483648
    %v1479 = vxor.u32 %v1457, 2147483648
    %v1480 = vxor.u32 %v1462, 2147483648
    %v1481 = vxor.u32 %v1467, 2147483648
    %v1482 = vxor.u32 %v1472, 2147483648
    %v1483 = vmul.f32 %v1475, 1.442695
    %v1484 = vpow.pop %v1483
    %v1485 = vmul.f32 %v1476, 1.442695
    %v1486 = vpow.pop %v1485
    %v1487 = vmul.f32 %v1477, 1.442695
    %v1488 = vpow.pop %v1487
    %v1489 = vmul.f32 %v1478, 1.442695
    %v1490 = vpow.pop %v1489
    %v1491 = vmul.f32 %v1479, 1.442695
    %v1492 = vpow.pop %v1491
    %v1493 = vmul.f32 %v1480, 1.442695
    %v1494 = vpow.pop %v1493
    %v1495 = vmul.f32 %v1481, 1.442695
    %v1496 = vpow.pop %v1495
    %v1497 = vmul.f32 %v1482, 1.442695
    %v1498 = vpow.pop %v1497
    %v1499 = vadd.f32 %v1484, 1.0
    %v1500 = vadd.f32 %v1486, 1.0
    %v1501 = vadd.f32 %v1488, 1.0
    %v1502 = vadd.f32 %v1490, 1.0
    %v1503 = vadd.f32 %v1492, 1.0
    %v1504 = vadd.f32 %v1494, 1.0
    %v1505 = vadd.f32 %v1496, 1.0
    %v1506 = vadd.f32 %v1498, 1.0
    %v1507 = vrcp.pop %v1499
    %v1508 = vmul.f32 1.0, %v1507
    %v1509 = vrcp.pop %v1500
    %v1510 = vmul.f32 1.0, %v1509
    %v1511 = vrcp.pop %v1501
    %v1512 = vmul.f32 1.0, %v1511
    %v1513 = vrcp.pop %v1502
    %v1514 = vmul.f32 1.0, %v1513
    %v1515 = vrcp.pop %v1503
    %v1516 = vmul.f32 1.0, %v1515
    %v1517 = vrcp.pop %v1504
    %v1518 = vmul.f32 1.0, %v1517
    %v1519 = vrcp.pop %v1505
    %v1520 = vmul.f32 1.0, %v1519
    %v1521 = vrcp.pop %v1506
    %v1522 = vmul.f32 1.0, %v1521
    %v1523 = vld [vmem:[%s20] sm:$0x1]
    %v1525 = vlaneseq
    %v1526 = vshrl.u32 %v1525, 7
    %v1527 = vsub.s32 0, %v1526
    %v1528 = vrot.slane %v1523, %v1527
    %v1530 = vmul.f32 %v1508, %v1528
    %v1531 = vmul.f32 %v1510, %v1528
    %v1532 = vmul.f32 %v1512, %v1528
    %v1533 = vmul.f32 %v1514, %v1528
    %v1534 = vmul.f32 %v1516, %v1528
    %v1535 = vmul.f32 %v1518, %v1528
    %v1536 = vmul.f32 %v1520, %v1528
    %v1537 = vmul.f32 %v1522, %v1528
    %vm1538 = vcmask 130048
    %v1539 = vsel %vm1538, %v1530, 0.0
    %1540 = vadd.xlane.f32.xlu0 %v1539
    %v1541 = vpop.xlane.xlu0 %1540
    %v1542 = vsel %vm1538, %v1531, 0.0
    %1543 = vadd.xlane.f32.xlu0 %v1542
    %v1544 = vpop.xlane.xlu0 %1543
    %v1545 = vsel %vm1538, %v1532, 0.0
    %1546 = vadd.xlane.f32.xlu0 %v1545
    %v1547 = vpop.xlane.xlu0 %1546
    %v1548 = vsel %vm1538, %v1533, 0.0
    %1549 = vadd.xlane.f32.xlu0 %v1548
    %v1550 = vpop.xlane.xlu0 %1549
    %v1551 = vsel %vm1538, %v1534, 0.0
    %1552 = vadd.xlane.f32.xlu0 %v1551
    %v1553 = vpop.xlane.xlu0 %1552
    %v1554 = vsel %vm1538, %v1535, 0.0
    %1555 = vadd.xlane.f32.xlu0 %v1554
    %v1556 = vpop.xlane.xlu0 %1555
    %v1557 = vsel %vm1538, %v1536, 0.0
    %1558 = vadd.xlane.f32.xlu0 %v1557
    %v1559 = vpop.xlane.xlu0 %1558
    %v1560 = vsel %vm1538, %v1537, 0.0
    %1561 = vadd.xlane.f32.xlu0 %v1560
    %v1562 = vpop.xlane.xlu0 %1561
    %v1563 = vld [vmem:[#allocation8] sm:$0x1]
    %v1565 = vlaneseq
    %v1566 = vshrl.u32 %v1565, 7
    %v1567 = vsub.s32 0, %v1566
    %v1568 = vrot.slane %v1563, %v1567
    %v1570 = vadd.f32 %v1541, %v1568
    %v1571 = vadd.f32 %v1544, %v1568
    %v1572 = vadd.f32 %v1547, %v1568
    %v1573 = vadd.f32 %v1550, %v1568
    %v1574 = vadd.f32 %v1553, %v1568
    %v1575 = vadd.f32 %v1556, %v1568
    %v1576 = vadd.f32 %v1559, %v1568
    %v1577 = vadd.f32 %v1562, %v1568
    %v1578 = vld [vmem:[%s3] sm:$0xff]
    %vm1579 = vcmp.gt.s32.totalorder %v1578, 0
    %vm1580 = vcmp.gt.s32.totalorder %v1578, 1
    %vm1581 = vcmp.gt.s32.totalorder %v1578, 2
    %vm1582 = vcmp.gt.s32.totalorder %v1578, 3
    %vm1583 = vcmp.gt.s32.totalorder %v1578, 4
    %vm1584 = vcmp.gt.s32.totalorder %v1578, 5
    %vm1585 = vcmp.gt.s32.totalorder %v1578, 6
    %vm1586 = vcmp.gt.s32.totalorder %v1578, 7
    %v1587 = vsel %vm1579, %v1570, 0.0
    %v1588 = vsel %vm1580, %v1571, 0.0
    %v1589 = vsel %vm1581, %v1572, 0.0
    %v1590 = vsel %vm1582, %v1573, 0.0
    %v1591 = vsel %vm1583, %v1574, 0.0
    %v1592 = vsel %vm1584, %v1575, 0.0
    %v1593 = vsel %vm1585, %v1576, 0.0
    %v1594 = vsel %vm1586, %v1577, 0.0
    %1596 = vset.pattern.permute.xlu0 0
    %1597 = vperm.xlu0 %1596, %v1587
    %v1598 = vpop.permute.xlu0 %1597
    %1601 = vset.pattern.permute.xlu0 0
    %1602 = vperm.xlu0 %1601, %v1588
    %v1603 = vpop.permute.xlu0 %1602
    %1606 = vset.pattern.permute.xlu0 0
    %1607 = vperm.xlu0 %1606, %v1589
    %v1608 = vpop.permute.xlu0 %1607
    %1611 = vset.pattern.permute.xlu0 0
    %1612 = vperm.xlu0 %1611, %v1590
    %v1613 = vpop.permute.xlu0 %1612
    %1616 = vset.pattern.permute.xlu0 0
    %1617 = vperm.xlu0 %1616, %v1591
    %v1618 = vpop.permute.xlu0 %1617
    %1621 = vset.pattern.permute.xlu0 0
    %1622 = vperm.xlu0 %1621, %v1592
    %v1623 = vpop.permute.xlu0 %1622
    %1626 = vset.pattern.permute.xlu0 0
    %1627 = vperm.xlu0 %1626, %v1593
    %v1628 = vpop.permute.xlu0 %1627
    %1631 = vset.pattern.permute.xlu0 0
    %1632 = vperm.xlu0 %1631, %v1594
    %v1633 = vpop.permute.xlu0 %1632
    %v1635 = vmul.f32 %v1598, %v900
    %v1636 = vmul.f32 %v1603, %v901
    %v1637 = vmul.f32 %v1608, %v902
    %v1638 = vmul.f32 %v1613, %v903
    %v1639 = vmul.f32 %v1618, %v904
    %v1640 = vmul.f32 %v1623, %v905
    %v1641 = vmul.f32 %v1628, %v906
    %v1642 = vmul.f32 %v1633, %v907
    %v1643 = vsel %vm235, %v1635, 0.0
    %v1644 = vsel %vm235, %v1636, 0.0
    %v1645 = vadd.f32 %v1643, %v1644
    %v1646 = vsel %vm235, %v1637, 0.0
    %v1647 = vadd.f32 %v1645, %v1646
    %v1648 = vsel %vm235, %v1638, 0.0
    %v1649 = vadd.f32 %v1647, %v1648
    %v1650 = vsel %vm235, %v1639, 0.0
    %v1651 = vadd.f32 %v1649, %v1650
    %v1652 = vsel %vm235, %v1640, 0.0
    %v1653 = vadd.f32 %v1651, %v1652
    %v1654 = vsel %vm235, %v1641, 0.0
    %v1655 = vadd.f32 %v1653, %v1654
    %v1656 = vsel %vm235, %v1642, 0.0
    %v1657 = vadd.f32 %v1655, %v1656
    %1658 = vst.msk [vmem:[#allocation27] sm:$0xff] %vm235, %v1657
    // Predicated region
    $region137: #{tpu_custom_call.1} parent=1 // pred_check
      _
    $region138: #{tpu_custom_call.1} parent=1 // pred_check_branch
      %1660 = sbr.rel (0) target = $region140
    $region139: #{tpu_custom_call.1} parent=1 // pred_region
      %s1662 = ssub.s32 128, 128
      %1663 = vsyncadd [#allocation11], %s1662
      %s1665 = sshll.u32 [#allocation27], 4
      %s1666 = int_to_ptr.vmem [resolvable:$true] %s1665
      %1668 = dma.vmem_to_hbm [thread:$0]  %s1666, 128, %s22, [#allocation11]
    $region140: #{tpu_custom_call.1} parent=1 // pred_fallthru
      _
    // Predicated region
    $region141: #{tpu_custom_call.1} parent=1 // pred_check
      _
    $region142: #{tpu_custom_call.1} parent=1 // pred_check_branch
      %1670 = sbr.rel (0) target = $region144
    $region143: #{tpu_custom_call.1} parent=1 // pred_region
      %1671 = dma.done [#allocation11], 128
    $region144: #{tpu_custom_call.1} parent=1 // pred_fallthru
      _
    %1672 = vsyncpa [#allocation10], 1
    %1673 = vsyncpa [#allocation13], 1
    %1674 = vsyncpa [#allocation16], 1
    %1675 = vsyncpa [#allocation19], 1
    %1676 = vsyncpa [#allocation22], 1
    %1677 = vsyncpa [#allocation25], 1
    %1678 = vsyncpa [#allocation11], 1

</llo_original>
